<compile_context>
chip_gen: v7x
topology: tpu7x:2x2x1
jax: 0.10.0
libtpu: 0.0.40
codegen_flags: <defaults>
</compile_context>

<pallas_src>
import numpy as np
import jax
import jax.numpy as jnp
from jax import lax
from jax.experimental import pallas as pl
from jax.experimental.pallas import tpu as pltpu

LRELU_SLOPE = 0.2
BN_EPS = 1e-5


def _leaky(x):
    return jnp.where(x >= 0, x, LRELU_SLOPE * x)


# ----------------------------- fused Pallas kernel ---------------------------

def _fused_discriminator_kernel(p1_ref, w1_ref, w2_ref, g2_ref, b2_ref,
                                s3_ref, w3_ref, g3_ref, b3_ref, w4_ref,
                                o_ref):
    f32 = jnp.float32
    bf16 = jnp.bfloat16
    n_batch = o_ref.shape[0]

    # ---- layers 1+2: two lane-dense MXU matmuls ------------------------------
    # patches2[m2, o*32+c1] = LeakyReLU(conv1 value in the receptive field)  (98, 512)
    patches2 = _leaky(jnp.dot(p1_ref[...], w1_ref[...],
                              preferred_element_type=f32))
    y2 = jnp.dot(patches2.astype(bf16), w2_ref[...],
                 preferred_element_type=f32)                       # (98, 64)

    # BatchNorm2d(64) with batch stats over all N*7*7 = 98 rows + LeakyReLU
    mean2 = jnp.mean(y2, axis=0, keepdims=True)
    var2 = jnp.mean((y2 - mean2) ** 2, axis=0, keepdims=True)
    act2 = _leaky((y2 - mean2) * lax.rsqrt(var2 + BN_EPS)
                  * g2_ref[...] + b2_ref[...])                     # (98, 64)

    # ---- layer 3: 0/1 selection matmul gathers patch rows, 9 per-offset dots --
    p3 = jnp.dot(s3_ref[...], act2.astype(bf16),
                 preferred_element_type=f32)                       # (9*N*16, 64)
    m3 = n_batch * 16
    y3 = jnp.zeros((m3, w3_ref.shape[2]), f32)                     # (32, 128)
    for q in range(w3_ref.shape[0]):                               # 9 offsets, unrolled
        blk = p3[q * m3:(q + 1) * m3, :]                           # aligned slice
        y3 = y3 + jnp.dot(blk.astype(bf16), w3_ref[q],
                          preferred_element_type=f32)

    # BatchNorm2d(128) over all N*4*4 = 32 rows + LeakyReLU
    mean3 = jnp.mean(y3, axis=0, keepdims=True)
    var3 = jnp.mean((y3 - mean3) ** 2, axis=0, keepdims=True)
    act3 = _leaky((y3 - mean3) * lax.rsqrt(var3 + BN_EPS)
                  * g3_ref[...] + b3_ref[...])                     # (32, 128)

    # ---- layer 4: 4x4 no-pad conv to 1x1 == per-image dot product (VPU) ------
    e = act3.astype(bf16).astype(f32) * w4_ref[...].astype(f32)    # (32, 128)
    row = jnp.sum(e, axis=1, keepdims=True)                        # (32, 1)
    parts = [jnp.sum(row[n * 16:(n + 1) * 16, :], axis=0, keepdims=True)
             for n in range(n_batch)]
    y4 = jnp.concatenate(parts, axis=0)                            # (N, 1)
    o_ref[...] = 1.0 / (1.0 + jnp.exp(-y4))                        # Sigmoid


# ----------------------------- host-side prep --------------------------------

def _im2col(x, kh, kw, stride, pad):
    """x: (N, C, H, W) -> patches (N*Ho*Wo, C*kh*kw); inner order (C, kh, kw)."""
    N, C, H, W = x.shape
    xp = jnp.pad(x, ((0, 0), (0, 0), (pad, pad), (pad, pad)))
    Ho = (H + 2 * pad - kh) // stride + 1
    Wo = (W + 2 * pad - kw) // stride + 1
    cols = []
    for i in range(kh):
        for j in range(kw):
            cols.append(xp[:, :, i:i + stride * Ho:stride, j:j + stride * Wo:stride])
    p = jnp.stack(cols, axis=2)          # (N, C, kh*kw, Ho, Wo)
    p = p.transpose(0, 3, 4, 1, 2)       # (N, Ho, Wo, C, kh*kw)
    return p.reshape(N * Ho * Wo, C * kh * kw), Ho, Wo


def _l2_gather_indices(n_batch):
    """idx[o, m2]: row of the layer-1 patch matrix feeding layer-2 output m2 at
    kernel offset o = i*4+j, or the appended all-zero row (layer-2 padding)."""
    H1 = 14
    zero_row = n_batch * H1 * H1
    idx = np.full((16, n_batch * 49), zero_row, dtype=np.int32)
    for n in range(n_batch):
        for ho in range(7):
            for wo in range(7):
                m2 = n * 49 + ho * 7 + wo
                for i in range(4):
                    for j in range(4):
                        h1 = 2 * ho - 1 + i
                        w1 = 2 * wo - 1 + j
                        if 0 <= h1 < H1 and 0 <= w1 < H1:
                            idx[i * 4 + j, m2] = n * H1 * H1 + h1 * H1 + w1
    return idx


def _l3_selection(n_batch):
    """0/1 matrix (9*N*16, N*49); row q*N*16+m3 selects the layer-2 activation row
    feeding layer-3 output m3 at offset q = i*3+j (all-zero row = layer-3 padding)."""
    m3_tot = n_batch * 16
    sel = np.zeros((9, m3_tot, n_batch * 49), dtype=np.float32)
    for n in range(n_batch):
        for ho in range(4):
            for wo in range(4):
                m3 = n * 16 + ho * 4 + wo
                for i in range(3):
                    for j in range(3):
                        h2 = 2 * ho - 1 + i
                        w2 = 2 * wo - 1 + j
                        if 0 <= h2 < 7 and 0 <= w2 < 7:
                            sel[i * 3 + j, m3, n * 49 + h2 * 7 + w2] = 1.0
    return sel.reshape(9 * m3_tot, n_batch * 49)


def mnist_discriminator_forward(x, params):
    N = x.shape[0]
    f32, bf16 = jnp.float32, jnp.bfloat16

    # Input-side prep: nested im2col of x (the only layout work outside the kernel).
    p1, _, _ = _im2col(x, 4, 4, 2, 1)                            # (N*196, 16)
    p1_ext = jnp.concatenate([p1, jnp.zeros((1, p1.shape[1]), p1.dtype)], axis=0)
    idx = jnp.asarray(_l2_gather_indices(N))                     # (16, N*49)
    p1cat = p1_ext[idx].transpose(1, 0, 2).reshape(N * 49, 256)  # (N*49, 256)

    # Weights / constants rearranged for the fused kernel.
    w1_2d = params["w1"].reshape(32, 16).T                       # (16, 32)
    w1blk = jnp.kron(jnp.eye(16, dtype=f32), w1_2d)              # (256, 512) block-diag
    w2flat = params["w2"].transpose(2, 3, 1, 0).reshape(512, 64)
    s3 = jnp.asarray(_l3_selection(N))                           # (9*N*16, N*49)
    w3stk = params["w3"].transpose(2, 3, 1, 0).reshape(9, 64, 128)
    w4rep = jnp.tile(params["w4"].transpose(2, 3, 1, 0).reshape(16, 128), (N, 1))

    g2 = params["g2"].reshape(1, -1).astype(f32)
    b2 = params["b2"].reshape(1, -1).astype(f32)
    g3 = params["g3"].reshape(1, -1).astype(f32)
    b3 = params["b3"].reshape(1, -1).astype(f32)

    inputs = (p1cat.astype(bf16), w1blk.astype(bf16), w2flat.astype(bf16),
              g2, b2, s3.astype(bf16), w3stk.astype(bf16), g3, b3,
              w4rep.astype(bf16))

    vmem = pltpu.MemorySpace.VMEM
    return pl.pallas_call(
        _fused_discriminator_kernel,
        out_shape=jax.ShapeDtypeStruct((N, 1), f32),
        in_specs=[pl.BlockSpec(memory_space=vmem) for _ in inputs],
        out_specs=pl.BlockSpec(memory_space=vmem),
    )(*inputs)


# --------------------------- pure-JAX reference --------------------------------
# Mirrors the kernel's bf16 MXU input rounding (f32 accumulation) so the check is tight.

def _ref_forward(x, params):
    bf16, f32 = jnp.bfloat16, jnp.float32

    def conv(h, w, stride, pad):
        return lax.conv_general_dilated(
            h.astype(bf16), w.astype(bf16), (stride, stride),
            [(pad, pad), (pad, pad)],
            dimension_numbers=("NCHW", "OIHW", "NCHW"),
            preferred_element_type=f32)

    def lrelu(h):
        return jnp.where(h >= 0, h, LRELU_SLOPE * h)

    def bn(h, g, b):
        mean = jnp.mean(h, axis=(0, 2, 3), keepdims=True)
        var = jnp.mean((h - mean) ** 2, axis=(0, 2, 3), keepdims=True)
        return ((h - mean) * lax.rsqrt(var + BN_EPS)
                * g[None, :, None, None] + b[None, :, None, None])

    h = lrelu(conv(x, params["w1"], 2, 1))
    h = lrelu(bn(conv(h, params["w2"], 2, 1), params["g2"], params["b2"]))
    h = lrelu(bn(conv(h, params["w3"], 2, 1), params["g3"], params["b3"]))
    h = jax.nn.sigmoid(conv(h, params["w4"], 1, 0))
    return h.reshape(-1, 1)


if __name__ == "__main__":
    key = jax.random.PRNGKey(0)
    kx, k1, k2, k3, k4, kg2, kb2, kg3, kb3 = jax.random.split(key, 9)

    N, nc, ndf = 2, 1, 32
    # MNIST-shaped input: (batch, 1, 28, 28) NCHW
    x = jax.random.normal(kx, (N, nc, 28, 28), jnp.float32)

    # Deterministic DCGAN-style parameters (conv bias=False in the module).
    params = {
        "w1": 0.02 * jax.random.normal(k1, (ndf, nc, 4, 4), jnp.float32),
        "w2": 0.02 * jax.random.normal(k2, (ndf * 2, ndf, 4, 4), jnp.float32),
        "g2": 1.0 + 0.1 * jax.random.normal(kg2, (ndf * 2,), jnp.float32),
        "b2": 0.1 * jax.random.normal(kb2, (ndf * 2,), jnp.float32),
        "w3": 0.02 * jax.random.normal(k3, (ndf * 4, ndf * 2, 3, 3), jnp.float32),
        "g3": 1.0 + 0.1 * jax.random.normal(kg3, (ndf * 4,), jnp.float32),
        "b3": 0.1 * jax.random.normal(kb3, (ndf * 4,), jnp.float32),
        "w4": 0.02 * jax.random.normal(k4, (1, ndf * 4, 4, 4), jnp.float32),
    }

    out = jax.jit(mnist_discriminator_forward)(x, params)
    out = jax.block_until_ready(out)

    assert out.shape == (N, 1), out.shape
    ref = _ref_forward(x, params)
    max_err = float(jnp.max(jnp.abs(out - ref)))
    assert jnp.allclose(out, ref, atol=2e-3, rtol=2e-3), max_err

    print("KERNEL_OK")
</pallas_src>

<mosaic_0001>
module attributes {stable_mosaic.version = 11 : i64} {
  func.func @_fused_discriminator_kernel(%arg0: memref<98x256xbf16, #tpu.memory_space<vmem>>, %arg1: memref<256x512xbf16, #tpu.memory_space<vmem>>, %arg2: memref<512x64xbf16, #tpu.memory_space<vmem>>, %arg3: memref<1x64xf32, #tpu.memory_space<vmem>>, %arg4: memref<1x64xf32, #tpu.memory_space<vmem>>, %arg5: memref<288x98xbf16, #tpu.memory_space<vmem>>, %arg6: memref<9x64x128xbf16, #tpu.memory_space<vmem>>, %arg7: memref<1x128xf32, #tpu.memory_space<vmem>>, %arg8: memref<1x128xf32, #tpu.memory_space<vmem>>, %arg9: memref<32x128xbf16, #tpu.memory_space<vmem>>, %arg10: memref<2x1xf32, #tpu.memory_space<vmem>>) attributes {dimension_semantics = [], scalar_prefetch = 0 : i64, scratch_operands = 0 : i64, tpu.core_type = #tpu.core_type<tc>} {
    %c0 = arith.constant 0 : index
    %c0_0 = arith.constant 0 : index
    %0 = vector.load %arg0[%c0, %c0_0] : memref<98x256xbf16, #tpu.memory_space<vmem>>, vector<98x256xbf16>
    %c0_1 = arith.constant 0 : index
    %c0_2 = arith.constant 0 : index
    %1 = vector.load %arg1[%c0_1, %c0_2] : memref<256x512xbf16, #tpu.memory_space<vmem>>, vector<256x512xbf16>
    %cst = arith.constant dense<0.000000e+00> : vector<98x512xf32>
    %2 = tpu.matmul %0, %1, %cst {dimension_numbers = #tpu.dot_dimension_numbers<[1], [0], [0], [1], [0, 0, 1, 1], [], []>} : vector<98x256xbf16>, vector<256x512xbf16>, vector<98x512xf32> -> vector<98x512xf32>
    %cst_3 = arith.constant 0.000000e+00 : f32
    %3 = vector.broadcast %cst_3 : f32 to vector<98x512xf32>
    %4 = arith.cmpf oge, %2, %3 : vector<98x512xf32>
    %cst_4 = arith.constant 2.000000e-01 : f32
    %5 = vector.broadcast %cst_4 : f32 to vector<98x512xf32>
    %6 = arith.mulf %5, %2 : vector<98x512xf32>
    %7 = arith.select %4, %2, %6 : vector<98x512xi1>, vector<98x512xf32>
    %8 = arith.truncf %7 : vector<98x512xf32> to vector<98x512xbf16>
    %c0_5 = arith.constant 0 : index
    %c0_6 = arith.constant 0 : index
    %9 = vector.load %arg2[%c0_5, %c0_6] : memref<512x64xbf16, #tpu.memory_space<vmem>>, vector<512x64xbf16>
    %cst_7 = arith.constant dense<0.000000e+00> : vector<98x64xf32>
    %10 = tpu.matmul %8, %9, %cst_7 {dimension_numbers = #tpu.dot_dimension_numbers<[1], [0], [0], [1], [0, 0, 1, 1], [], []>} : vector<98x512xbf16>, vector<512x64xbf16>, vector<98x64xf32> -> vector<98x64xf32>
    %cst_8 = arith.constant dense<0.000000e+00> : vector<64xf32>
    %11 = vector.multi_reduction <add>, %10, %cst_8 [0] : vector<98x64xf32> to vector<64xf32>
    %12 = vector.shape_cast %11 : vector<64xf32> to vector<1x64xf32>
    %cst_9 = arith.constant 9.800000e+01 : f32
    %13 = vector.broadcast %cst_9 : f32 to vector<1x64xf32>
    %14 = arith.divf %12, %13 : vector<1x64xf32>
    %15 = vector.broadcast %14 : vector<1x64xf32> to vector<98x64xf32>
    %16 = arith.subf %10, %15 : vector<98x64xf32>
    %17 = arith.mulf %16, %16 : vector<98x64xf32>
    %cst_10 = arith.constant dense<0.000000e+00> : vector<64xf32>
    %18 = vector.multi_reduction <add>, %17, %cst_10 [0] : vector<98x64xf32> to vector<64xf32>
    %19 = vector.shape_cast %18 : vector<64xf32> to vector<1x64xf32>
    %cst_11 = arith.constant 9.800000e+01 : f32
    %20 = vector.broadcast %cst_11 : f32 to vector<1x64xf32>
    %21 = arith.divf %19, %20 : vector<1x64xf32>
    %22 = vector.broadcast %14 : vector<1x64xf32> to vector<98x64xf32>
    %23 = arith.subf %10, %22 : vector<98x64xf32>
    %cst_12 = arith.constant 9.99999974E-6 : f32
    %24 = vector.broadcast %cst_12 : f32 to vector<1x64xf32>
    %25 = arith.addf %21, %24 : vector<1x64xf32>
    %26 = math.rsqrt %25 : vector<1x64xf32>
    %27 = vector.broadcast %26 : vector<1x64xf32> to vector<98x64xf32>
    %28 = arith.mulf %23, %27 : vector<98x64xf32>
    %c0_13 = arith.constant 0 : index
    %c0_14 = arith.constant 0 : index
    %29 = vector.load %arg3[%c0_13, %c0_14] : memref<1x64xf32, #tpu.memory_space<vmem>>, vector<1x64xf32>
    %30 = vector.broadcast %29 : vector<1x64xf32> to vector<98x64xf32>
    %31 = arith.mulf %28, %30 : vector<98x64xf32>
    %c0_15 = arith.constant 0 : index
    %c0_16 = arith.constant 0 : index
    %32 = vector.load %arg4[%c0_15, %c0_16] : memref<1x64xf32, #tpu.memory_space<vmem>>, vector<1x64xf32>
    %33 = vector.broadcast %32 : vector<1x64xf32> to vector<98x64xf32>
    %34 = arith.addf %31, %33 : vector<98x64xf32>
    %cst_17 = arith.constant 0.000000e+00 : f32
    %35 = vector.broadcast %cst_17 : f32 to vector<98x64xf32>
    %36 = arith.cmpf oge, %34, %35 : vector<98x64xf32>
    %cst_18 = arith.constant 2.000000e-01 : f32
    %37 = vector.broadcast %cst_18 : f32 to vector<98x64xf32>
    %38 = arith.mulf %37, %34 : vector<98x64xf32>
    %39 = arith.select %36, %34, %38 : vector<98x64xi1>, vector<98x64xf32>
    %c0_19 = arith.constant 0 : index
    %c0_20 = arith.constant 0 : index
    %40 = vector.load %arg5[%c0_19, %c0_20] : memref<288x98xbf16, #tpu.memory_space<vmem>>, vector<288x98xbf16>
    %41 = arith.truncf %39 : vector<98x64xf32> to vector<98x64xbf16>
    %cst_21 = arith.constant dense<0.000000e+00> : vector<288x64xf32>
    %42 = tpu.matmul %40, %41, %cst_21 {dimension_numbers = #tpu.dot_dimension_numbers<[1], [0], [0], [1], [0, 0, 1, 1], [], []>} : vector<288x98xbf16>, vector<98x64xbf16>, vector<288x64xf32> -> vector<288x64xf32>
    %cst_22 = arith.constant 0.000000e+00 : f32
    %43 = vector.broadcast %cst_22 : f32 to vector<32x128xf32>
    %44 = vector.extract_strided_slice %42 {offsets = [0, 0], sizes = [32, 64], strides = [1, 1]} : vector<288x64xf32> to vector<32x64xf32>
    %45 = arith.truncf %44 : vector<32x64xf32> to vector<32x64xbf16>
    %c0_23 = arith.constant 0 : index
    %c0_24 = arith.constant 0 : index
    %c0_25 = arith.constant 0 : index
    %46 = vector.load %arg6[%c0_23, %c0_24, %c0_25] : memref<9x64x128xbf16, #tpu.memory_space<vmem>>, vector<1x64x128xbf16>
    %47 = vector.shape_cast %46 : vector<1x64x128xbf16> to vector<64x128xbf16>
    %cst_26 = arith.constant dense<0.000000e+00> : vector<32x128xf32>
    %48 = tpu.matmul %45, %47, %cst_26 {dimension_numbers = #tpu.dot_dimension_numbers<[1], [0], [0], [1], [0, 0, 1, 1], [], []>} : vector<32x64xbf16>, vector<64x128xbf16>, vector<32x128xf32> -> vector<32x128xf32>
    %49 = arith.addf %43, %48 : vector<32x128xf32>
    %50 = vector.extract_strided_slice %42 {offsets = [32, 0], sizes = [32, 64], strides = [1, 1]} : vector<288x64xf32> to vector<32x64xf32>
    %51 = arith.truncf %50 : vector<32x64xf32> to vector<32x64xbf16>
    %c1 = arith.constant 1 : index
    %c0_27 = arith.constant 0 : index
    %c0_28 = arith.constant 0 : index
    %52 = vector.load %arg6[%c1, %c0_27, %c0_28] : memref<9x64x128xbf16, #tpu.memory_space<vmem>>, vector<1x64x128xbf16>
    %53 = vector.shape_cast %52 : vector<1x64x128xbf16> to vector<64x128xbf16>
    %cst_29 = arith.constant dense<0.000000e+00> : vector<32x128xf32>
    %54 = tpu.matmul %51, %53, %cst_29 {dimension_numbers = #tpu.dot_dimension_numbers<[1], [0], [0], [1], [0, 0, 1, 1], [], []>} : vector<32x64xbf16>, vector<64x128xbf16>, vector<32x128xf32> -> vector<32x128xf32>
    %55 = arith.addf %49, %54 : vector<32x128xf32>
    %56 = vector.extract_strided_slice %42 {offsets = [64, 0], sizes = [32, 64], strides = [1, 1]} : vector<288x64xf32> to vector<32x64xf32>
    %57 = arith.truncf %56 : vector<32x64xf32> to vector<32x64xbf16>
    %c2 = arith.constant 2 : index
    %c0_30 = arith.constant 0 : index
    %c0_31 = arith.constant 0 : index
    %58 = vector.load %arg6[%c2, %c0_30, %c0_31] : memref<9x64x128xbf16, #tpu.memory_space<vmem>>, vector<1x64x128xbf16>
    %59 = vector.shape_cast %58 : vector<1x64x128xbf16> to vector<64x128xbf16>
    %cst_32 = arith.constant dense<0.000000e+00> : vector<32x128xf32>
    %60 = tpu.matmul %57, %59, %cst_32 {dimension_numbers = #tpu.dot_dimension_numbers<[1], [0], [0], [1], [0, 0, 1, 1], [], []>} : vector<32x64xbf16>, vector<64x128xbf16>, vector<32x128xf32> -> vector<32x128xf32>
    %61 = arith.addf %55, %60 : vector<32x128xf32>
    %62 = vector.extract_strided_slice %42 {offsets = [96, 0], sizes = [32, 64], strides = [1, 1]} : vector<288x64xf32> to vector<32x64xf32>
    %63 = arith.truncf %62 : vector<32x64xf32> to vector<32x64xbf16>
    %c3 = arith.constant 3 : index
    %c0_33 = arith.constant 0 : index
    %c0_34 = arith.constant 0 : index
    %64 = vector.load %arg6[%c3, %c0_33, %c0_34] : memref<9x64x128xbf16, #tpu.memory_space<vmem>>, vector<1x64x128xbf16>
    %65 = vector.shape_cast %64 : vector<1x64x128xbf16> to vector<64x128xbf16>
    %cst_35 = arith.constant dense<0.000000e+00> : vector<32x128xf32>
    %66 = tpu.matmul %63, %65, %cst_35 {dimension_numbers = #tpu.dot_dimension_numbers<[1], [0], [0], [1], [0, 0, 1, 1], [], []>} : vector<32x64xbf16>, vector<64x128xbf16>, vector<32x128xf32> -> vector<32x128xf32>
    %67 = arith.addf %61, %66 : vector<32x128xf32>
    %68 = vector.extract_strided_slice %42 {offsets = [128, 0], sizes = [32, 64], strides = [1, 1]} : vector<288x64xf32> to vector<32x64xf32>
    %69 = arith.truncf %68 : vector<32x64xf32> to vector<32x64xbf16>
    %c4 = arith.constant 4 : index
    %c0_36 = arith.constant 0 : index
    %c0_37 = arith.constant 0 : index
    %70 = vector.load %arg6[%c4, %c0_36, %c0_37] : memref<9x64x128xbf16, #tpu.memory_space<vmem>>, vector<1x64x128xbf16>
    %71 = vector.shape_cast %70 : vector<1x64x128xbf16> to vector<64x128xbf16>
    %cst_38 = arith.constant dense<0.000000e+00> : vector<32x128xf32>
    %72 = tpu.matmul %69, %71, %cst_38 {dimension_numbers = #tpu.dot_dimension_numbers<[1], [0], [0], [1], [0, 0, 1, 1], [], []>} : vector<32x64xbf16>, vector<64x128xbf16>, vector<32x128xf32> -> vector<32x128xf32>
    %73 = arith.addf %67, %72 : vector<32x128xf32>
    %74 = vector.extract_strided_slice %42 {offsets = [160, 0], sizes = [32, 64], strides = [1, 1]} : vector<288x64xf32> to vector<32x64xf32>
    %75 = arith.truncf %74 : vector<32x64xf32> to vector<32x64xbf16>
    %c5 = arith.constant 5 : index
    %c0_39 = arith.constant 0 : index
    %c0_40 = arith.constant 0 : index
    %76 = vector.load %arg6[%c5, %c0_39, %c0_40] : memref<9x64x128xbf16, #tpu.memory_space<vmem>>, vector<1x64x128xbf16>
    %77 = vector.shape_cast %76 : vector<1x64x128xbf16> to vector<64x128xbf16>
    %cst_41 = arith.constant dense<0.000000e+00> : vector<32x128xf32>
    %78 = tpu.matmul %75, %77, %cst_41 {dimension_numbers = #tpu.dot_dimension_numbers<[1], [0], [0], [1], [0, 0, 1, 1], [], []>} : vector<32x64xbf16>, vector<64x128xbf16>, vector<32x128xf32> -> vector<32x128xf32>
    %79 = arith.addf %73, %78 : vector<32x128xf32>
    %80 = vector.extract_strided_slice %42 {offsets = [192, 0], sizes = [32, 64], strides = [1, 1]} : vector<288x64xf32> to vector<32x64xf32>
    %81 = arith.truncf %80 : vector<32x64xf32> to vector<32x64xbf16>
    %c6 = arith.constant 6 : index
    %c0_42 = arith.constant 0 : index
    %c0_43 = arith.constant 0 : index
    %82 = vector.load %arg6[%c6, %c0_42, %c0_43] : memref<9x64x128xbf16, #tpu.memory_space<vmem>>, vector<1x64x128xbf16>
    %83 = vector.shape_cast %82 : vector<1x64x128xbf16> to vector<64x128xbf16>
    %cst_44 = arith.constant dense<0.000000e+00> : vector<32x128xf32>
    %84 = tpu.matmul %81, %83, %cst_44 {dimension_numbers = #tpu.dot_dimension_numbers<[1], [0], [0], [1], [0, 0, 1, 1], [], []>} : vector<32x64xbf16>, vector<64x128xbf16>, vector<32x128xf32> -> vector<32x128xf32>
    %85 = arith.addf %79, %84 : vector<32x128xf32>
    %86 = vector.extract_strided_slice %42 {offsets = [224, 0], sizes = [32, 64], strides = [1, 1]} : vector<288x64xf32> to vector<32x64xf32>
    %87 = arith.truncf %86 : vector<32x64xf32> to vector<32x64xbf16>
    %c7 = arith.constant 7 : index
    %c0_45 = arith.constant 0 : index
    %c0_46 = arith.constant 0 : index
    %88 = vector.load %arg6[%c7, %c0_45, %c0_46] : memref<9x64x128xbf16, #tpu.memory_space<vmem>>, vector<1x64x128xbf16>
    %89 = vector.shape_cast %88 : vector<1x64x128xbf16> to vector<64x128xbf16>
    %cst_47 = arith.constant dense<0.000000e+00> : vector<32x128xf32>
    %90 = tpu.matmul %87, %89, %cst_47 {dimension_numbers = #tpu.dot_dimension_numbers<[1], [0], [0], [1], [0, 0, 1, 1], [], []>} : vector<32x64xbf16>, vector<64x128xbf16>, vector<32x128xf32> -> vector<32x128xf32>
    %91 = arith.addf %85, %90 : vector<32x128xf32>
    %92 = vector.extract_strided_slice %42 {offsets = [256, 0], sizes = [32, 64], strides = [1, 1]} : vector<288x64xf32> to vector<32x64xf32>
    %93 = arith.truncf %92 : vector<32x64xf32> to vector<32x64xbf16>
    %c8 = arith.constant 8 : index
    %c0_48 = arith.constant 0 : index
    %c0_49 = arith.constant 0 : index
    %94 = vector.load %arg6[%c8, %c0_48, %c0_49] : memref<9x64x128xbf16, #tpu.memory_space<vmem>>, vector<1x64x128xbf16>
    %95 = vector.shape_cast %94 : vector<1x64x128xbf16> to vector<64x128xbf16>
    %cst_50 = arith.constant dense<0.000000e+00> : vector<32x128xf32>
    %96 = tpu.matmul %93, %95, %cst_50 {dimension_numbers = #tpu.dot_dimension_numbers<[1], [0], [0], [1], [0, 0, 1, 1], [], []>} : vector<32x64xbf16>, vector<64x128xbf16>, vector<32x128xf32> -> vector<32x128xf32>
    %97 = arith.addf %91, %96 : vector<32x128xf32>
    %cst_51 = arith.constant dense<0.000000e+00> : vector<128xf32>
    %98 = vector.multi_reduction <add>, %97, %cst_51 [0] : vector<32x128xf32> to vector<128xf32>
    %99 = vector.shape_cast %98 : vector<128xf32> to vector<1x128xf32>
    %cst_52 = arith.constant 3.200000e+01 : f32
    %100 = vector.broadcast %cst_52 : f32 to vector<1x128xf32>
    %101 = arith.divf %99, %100 : vector<1x128xf32>
    %102 = vector.broadcast %101 : vector<1x128xf32> to vector<32x128xf32>
    %103 = arith.subf %97, %102 : vector<32x128xf32>
    %104 = arith.mulf %103, %103 : vector<32x128xf32>
    %cst_53 = arith.constant dense<0.000000e+00> : vector<128xf32>
    %105 = vector.multi_reduction <add>, %104, %cst_53 [0] : vector<32x128xf32> to vector<128xf32>
    %106 = vector.shape_cast %105 : vector<128xf32> to vector<1x128xf32>
    %cst_54 = arith.constant 3.200000e+01 : f32
    %107 = vector.broadcast %cst_54 : f32 to vector<1x128xf32>
    %108 = arith.divf %106, %107 : vector<1x128xf32>
    %109 = vector.broadcast %101 : vector<1x128xf32> to vector<32x128xf32>
    %110 = arith.subf %97, %109 : vector<32x128xf32>
    %cst_55 = arith.constant 9.99999974E-6 : f32
    %111 = vector.broadcast %cst_55 : f32 to vector<1x128xf32>
    %112 = arith.addf %108, %111 : vector<1x128xf32>
    %113 = math.rsqrt %112 : vector<1x128xf32>
    %114 = vector.broadcast %113 : vector<1x128xf32> to vector<32x128xf32>
    %115 = arith.mulf %110, %114 : vector<32x128xf32>
    %c0_56 = arith.constant 0 : index
    %c0_57 = arith.constant 0 : index
    %116 = vector.load %arg7[%c0_56, %c0_57] : memref<1x128xf32, #tpu.memory_space<vmem>>, vector<1x128xf32>
    %117 = vector.broadcast %116 : vector<1x128xf32> to vector<32x128xf32>
    %118 = arith.mulf %115, %117 : vector<32x128xf32>
    %c0_58 = arith.constant 0 : index
    %c0_59 = arith.constant 0 : index
    %119 = vector.load %arg8[%c0_58, %c0_59] : memref<1x128xf32, #tpu.memory_space<vmem>>, vector<1x128xf32>
    %120 = vector.broadcast %119 : vector<1x128xf32> to vector<32x128xf32>
    %121 = arith.addf %118, %120 : vector<32x128xf32>
    %cst_60 = arith.constant 0.000000e+00 : f32
    %122 = vector.broadcast %cst_60 : f32 to vector<32x128xf32>
    %123 = arith.cmpf oge, %121, %122 : vector<32x128xf32>
    %cst_61 = arith.constant 2.000000e-01 : f32
    %124 = vector.broadcast %cst_61 : f32 to vector<32x128xf32>
    %125 = arith.mulf %124, %121 : vector<32x128xf32>
    %126 = arith.select %123, %121, %125 : vector<32x128xi1>, vector<32x128xf32>
    %127 = arith.truncf %126 : vector<32x128xf32> to vector<32x128xbf16>
    %128 = arith.extf %127 : vector<32x128xbf16> to vector<32x128xf32>
    %c0_62 = arith.constant 0 : index
    %c0_63 = arith.constant 0 : index
    %129 = vector.load %arg9[%c0_62, %c0_63] : memref<32x128xbf16, #tpu.memory_space<vmem>>, vector<32x128xbf16>
    %130 = arith.extf %129 : vector<32x128xbf16> to vector<32x128xf32>
    %131 = arith.mulf %128, %130 : vector<32x128xf32>
    %cst_64 = arith.constant dense<0.000000e+00> : vector<32xf32>
    %132 = vector.multi_reduction <add>, %131, %cst_64 [1] : vector<32x128xf32> to vector<32xf32>
    %133 = vector.shape_cast %132 : vector<32xf32> to vector<32x1xf32>
    %134 = vector.extract_strided_slice %133 {offsets = [0, 0], sizes = [16, 1], strides = [1, 1]} : vector<32x1xf32> to vector<16x1xf32>
    %cst_65 = arith.constant dense<0.000000e+00> : vector<1xf32>
    %135 = vector.multi_reduction <add>, %134, %cst_65 [0] : vector<16x1xf32> to vector<1xf32>
    %136 = vector.shape_cast %135 : vector<1xf32> to vector<1x1xf32>
    %137 = vector.extract_strided_slice %133 {offsets = [16, 0], sizes = [16, 1], strides = [1, 1]} : vector<32x1xf32> to vector<16x1xf32>
    %cst_66 = arith.constant dense<0.000000e+00> : vector<1xf32>
    %138 = vector.multi_reduction <add>, %137, %cst_66 [0] : vector<16x1xf32> to vector<1xf32>
    %139 = vector.shape_cast %138 : vector<1xf32> to vector<1x1xf32>
    %140 = tpu.concatenate %136, %139 in 0 : vector<1x1xf32>, vector<1x1xf32> -> vector<2x1xf32>
    %cst_67 = arith.constant 0.000000e+00 : f32
    %141 = vector.broadcast %cst_67 : f32 to vector<2x1xf32>
    %142 = arith.subf %141, %140 : vector<2x1xf32>
    %143 = math.exp %142 : vector<2x1xf32>
    %cst_68 = arith.constant 1.000000e+00 : f32
    %144 = vector.broadcast %cst_68 : f32 to vector<2x1xf32>
    %145 = arith.addf %144, %143 : vector<2x1xf32>
    %cst_69 = arith.constant 1.000000e+00 : f32
    %146 = vector.broadcast %cst_69 : f32 to vector<2x1xf32>
    %147 = arith.divf %146, %145 : vector<2x1xf32>
    %c0_70 = arith.constant 0 : index
    %c0_71 = arith.constant 0 : index
    %148 = vector.load %arg10[%c0_70, %c0_71] : memref<2x1xf32, #tpu.memory_space<vmem>>, vector<2x1xf32>
    tpu.vector_store %arg10[%c0_70, %c0_71], %147 {strides = array<i32>} : memref<2x1xf32, #tpu.memory_space<vmem>>, vector<2x1xf32>,
    return
  }
}

</mosaic_0001>

<llo_original>
// kernel: mnist_discriminator_forward.1
$region0: #{mnist_discriminator_forward.1}
  #allocation0 [shape = 'u32[]', space=smem, size = 0x4, offset = 0x4, fixed_abs, tag = 'smem constant byte address 0x4 - core index']
  #allocation1 [shape = 'u32[144,128]{1,0:T(1,128)}', space=vmem, size = 0x12000, scoped, tag = 'internal scratch']
  %s0 = inlined_call_operand.vmem [shape: bf16[98,256], index: 0, kind: input, shape index: {}]
  %s1 = inlined_call_operand.vmem [shape: bf16[256,512], index: 1, kind: input, shape index: {}]
  %s2 = inlined_call_operand.vmem [shape: bf16[512,64], index: 2, kind: input, shape index: {}]
  %s3 = inlined_call_operand.vmem [shape: f32[1,64], index: 3, kind: input, shape index: {}]
  %s4 = inlined_call_operand.vmem [shape: f32[1,64], index: 4, kind: input, shape index: {}]
  %s5 = inlined_call_operand.vmem [shape: bf16[288,98], index: 5, kind: input, shape index: {}]
  %s6 = inlined_call_operand.vmem [shape: bf16[9,64,128], index: 6, kind: input, shape index: {}]
  %s7 = inlined_call_operand.vmem [shape: f32[1,128], index: 7, kind: input, shape index: {}]
  %s8 = inlined_call_operand.vmem [shape: f32[1,128], index: 8, kind: input, shape index: {}]
  %s9 = inlined_call_operand.vmem [shape: bf16[32,128], index: 9, kind: input, shape index: {}]
  %s10 = inlined_call_operand.vmem [shape: f32[2,1], index: 10, kind: output, shape index: {}]
  %s11 = sld [smem:[#allocation0]]
  $region50: #{mnist_discriminator_forward.1} parent=0
    _
  %s13 = ssub.s32 1, %s11
  %s14 = scalar_select 0, %s13, %s11
  // Predicated region
  $region2: #{mnist_discriminator_forward.1} parent=0 // pred_check
    _
  $region3: #{mnist_discriminator_forward.1} parent=0 // pred_check_branch
    %16 = sbr.rel (0) target = $region5
  $region4: #{mnist_discriminator_forward.1} parent=0 // pred_region
    _
  $region5: #{mnist_discriminator_forward.1} parent=0 // pred_fallthru
    _
  // Predicated region
  $region6: #{mnist_discriminator_forward.1} parent=0 // pred_check
    _
  $region7: #{mnist_discriminator_forward.1} parent=0 // pred_check_branch
    %18 = sbr.rel (0) target = $region9
  $region8: #{mnist_discriminator_forward.1} parent=0 // pred_region
    _
  $region9: #{mnist_discriminator_forward.1} parent=0 // pred_fallthru
    _
  // Predicated region
  $region10: #{mnist_discriminator_forward.1} parent=0 // pred_check
    _
  $region11: #{mnist_discriminator_forward.1} parent=0 // pred_check_branch
    %20 = sbr.rel (0) target = $region13
  $region12: #{mnist_discriminator_forward.1} parent=0 // pred_region
    _
  $region13: #{mnist_discriminator_forward.1} parent=0 // pred_fallthru
    _
  // Predicated region
  $region14: #{mnist_discriminator_forward.1} parent=0 // pred_check
    _
  $region15: #{mnist_discriminator_forward.1} parent=0 // pred_check_branch
    %22 = sbr.rel (0) target = $region17
  $region16: #{mnist_discriminator_forward.1} parent=0 // pred_region
    _
  $region17: #{mnist_discriminator_forward.1} parent=0 // pred_fallthru
    _
  // Predicated region
  $region18: #{mnist_discriminator_forward.1} parent=0 // pred_check
    _
  $region19: #{mnist_discriminator_forward.1} parent=0 // pred_check_branch
    %24 = sbr.rel (0) target = $region21
  $region20: #{mnist_discriminator_forward.1} parent=0 // pred_region
    _
  $region21: #{mnist_discriminator_forward.1} parent=0 // pred_fallthru
    _
  // Predicated region
  $region22: #{mnist_discriminator_forward.1} parent=0 // pred_check
    _
  $region23: #{mnist_discriminator_forward.1} parent=0 // pred_check_branch
    %26 = sbr.rel (0) target = $region25
  $region24: #{mnist_discriminator_forward.1} parent=0 // pred_region
    _
  $region25: #{mnist_discriminator_forward.1} parent=0 // pred_fallthru
    _
  // Predicated region
  $region26: #{mnist_discriminator_forward.1} parent=0 // pred_check
    _
  $region27: #{mnist_discriminator_forward.1} parent=0 // pred_check_branch
    %28 = sbr.rel (0) target = $region29
  $region28: #{mnist_discriminator_forward.1} parent=0 // pred_region
    _
  $region29: #{mnist_discriminator_forward.1} parent=0 // pred_fallthru
    _
  // Predicated region
  $region30: #{mnist_discriminator_forward.1} parent=0 // pred_check
    _
  $region31: #{mnist_discriminator_forward.1} parent=0 // pred_check_branch
    %30 = sbr.rel (0) target = $region33
  $region32: #{mnist_discriminator_forward.1} parent=0 // pred_region
    _
  $region33: #{mnist_discriminator_forward.1} parent=0 // pred_fallthru
    _
  // Predicated region
  $region34: #{mnist_discriminator_forward.1} parent=0 // pred_check
    _
  $region35: #{mnist_discriminator_forward.1} parent=0 // pred_check_branch
    %32 = sbr.rel (0) target = $region37
  $region36: #{mnist_discriminator_forward.1} parent=0 // pred_region
    _
  $region37: #{mnist_discriminator_forward.1} parent=0 // pred_fallthru
    _
  // Predicated region
  $region38: #{mnist_discriminator_forward.1} parent=0 // pred_check
    _
  $region39: #{mnist_discriminator_forward.1} parent=0 // pred_check_branch
    %34 = sbr.rel (0) target = $region41
  $region40: #{mnist_discriminator_forward.1} parent=0 // pred_region
    _
  $region41: #{mnist_discriminator_forward.1} parent=0 // pred_fallthru
    _
  %v36 = vld [vmem:[%s0] sm:$0xff]
  %v37 = vld [vmem:[%s0 + $0x8] sm:$0xff]
  %v38 = vld [vmem:[%s0 + $0x10] sm:$0xff]
  %v39 = vld [vmem:[%s0 + $0x18] sm:$0xff]
  %v40 = vld [vmem:[%s0 + $0x20] sm:$0xff]
  %v41 = vld [vmem:[%s0 + $0x28] sm:$0xff]
  %v42 = vld [vmem:[%s0 + $0x30] sm:$0xff]
  %v43 = vld [vmem:[%s0 + $0x38] sm:$0xff]
  %v44 = vld [vmem:[%s0 + $0x40] sm:$0xff]
  %v45 = vld [vmem:[%s0 + $0x48] sm:$0xff]
  %v46 = vld [vmem:[%s0 + $0x50] sm:$0xff]
  %v47 = vld [vmem:[%s0 + $0x58] sm:$0xff]
  %v48 = vld [vmem:[%s0 + $0x60] sm:$0x11]
  %v49 = vld [vmem:[%s1] sm:$0xff]
  %v50 = vld [vmem:[%s1 + $0x8] sm:$0xff]
  %v51 = vld [vmem:[%s1 + $0x10] sm:$0xff]
  %v52 = vld [vmem:[%s1 + $0x18] sm:$0xff]
  %v53 = vld [vmem:[%s1 + $0x20] sm:$0xff]
  %v54 = vld [vmem:[%s1 + $0x28] sm:$0xff]
  %v55 = vld [vmem:[%s1 + $0x30] sm:$0xff]
  %v56 = vld [vmem:[%s1 + $0x38] sm:$0xff]
  %v57 = vld [vmem:[%s1 + $0x40] sm:$0xff]
  %v58 = vld [vmem:[%s1 + $0x48] sm:$0xff]
  %v59 = vld [vmem:[%s1 + $0x50] sm:$0xff]
  %v60 = vld [vmem:[%s1 + $0x58] sm:$0xff]
  %v61 = vld [vmem:[%s1 + $0x60] sm:$0xff]
  %v62 = vld [vmem:[%s1 + $0x68] sm:$0xff]
  %v63 = vld [vmem:[%s1 + $0x70] sm:$0xff]
  %v64 = vld [vmem:[%s1 + $0x78] sm:$0xff]
  %v65 = vld [vmem:[%s1 + $0x80] sm:$0xff]
  %v66 = vld [vmem:[%s1 + $0x88] sm:$0xff]
  %v67 = vld [vmem:[%s1 + $0x90] sm:$0xff]
  %v68 = vld [vmem:[%s1 + $0x98] sm:$0xff]
  %v69 = vld [vmem:[%s1 + $0xa0] sm:$0xff]
  %v70 = vld [vmem:[%s1 + $0xa8] sm:$0xff]
  %v71 = vld [vmem:[%s1 + $0xb0] sm:$0xff]
  %v72 = vld [vmem:[%s1 + $0xb8] sm:$0xff]
  %v73 = vld [vmem:[%s1 + $0xc0] sm:$0xff]
  %v74 = vld [vmem:[%s1 + $0xc8] sm:$0xff]
  %v75 = vld [vmem:[%s1 + $0xd0] sm:$0xff]
  %v76 = vld [vmem:[%s1 + $0xd8] sm:$0xff]
  %v77 = vld [vmem:[%s1 + $0xe0] sm:$0xff]
  %v78 = vld [vmem:[%s1 + $0xe8] sm:$0xff]
  %v79 = vld [vmem:[%s1 + $0xf0] sm:$0xff]
  %v80 = vld [vmem:[%s1 + $0xf8] sm:$0xff]
  %v81 = vld [vmem:[%s1 + $0x100] sm:$0xff]
  %v82 = vld [vmem:[%s1 + $0x108] sm:$0xff]
  %v83 = vld [vmem:[%s1 + $0x110] sm:$0xff]
  %v84 = vld [vmem:[%s1 + $0x118] sm:$0xff]
  %v85 = vld [vmem:[%s1 + $0x120] sm:$0xff]
  %v86 = vld [vmem:[%s1 + $0x128] sm:$0xff]
  %v87 = vld [vmem:[%s1 + $0x130] sm:$0xff]
  %v88 = vld [vmem:[%s1 + $0x138] sm:$0xff]
  %v89 = vld [vmem:[%s1 + $0x140] sm:$0xff]
  %v90 = vld [vmem:[%s1 + $0x148] sm:$0xff]
  %v91 = vld [vmem:[%s1 + $0x150] sm:$0xff]
  %v92 = vld [vmem:[%s1 + $0x158] sm:$0xff]
  %v93 = vld [vmem:[%s1 + $0x160] sm:$0xff]
  %v94 = vld [vmem:[%s1 + $0x168] sm:$0xff]
  %v95 = vld [vmem:[%s1 + $0x170] sm:$0xff]
  %v96 = vld [vmem:[%s1 + $0x178] sm:$0xff]
  %v97 = vld [vmem:[%s1 + $0x180] sm:$0xff]
  %v98 = vld [vmem:[%s1 + $0x188] sm:$0xff]
  %v99 = vld [vmem:[%s1 + $0x190] sm:$0xff]
  %v100 = vld [vmem:[%s1 + $0x198] sm:$0xff]
  %v101 = vld [vmem:[%s1 + $0x1a0] sm:$0xff]
  %v102 = vld [vmem:[%s1 + $0x1a8] sm:$0xff]
  %v103 = vld [vmem:[%s1 + $0x1b0] sm:$0xff]
  %v104 = vld [vmem:[%s1 + $0x1b8] sm:$0xff]
  %v105 = vld [vmem:[%s1 + $0x1c0] sm:$0xff]
  %v106 = vld [vmem:[%s1 + $0x1c8] sm:$0xff]
  %v107 = vld [vmem:[%s1 + $0x1d0] sm:$0xff]
  %v108 = vld [vmem:[%s1 + $0x1d8] sm:$0xff]
  %v109 = vld [vmem:[%s1 + $0x1e0] sm:$0xff]
  %v110 = vld [vmem:[%s1 + $0x1e8] sm:$0xff]
  %v111 = vld [vmem:[%s1 + $0x1f0] sm:$0xff]
  %v112 = vld [vmem:[%s1 + $0x1f8] sm:$0xff]
  %v126 = vunpack.c.l.b16 %v36
  %v127 = vunpack.c.h.b16 %v36
  %v128 = vunpack.c.l.b16 %v37
  %v129 = vunpack.c.h.b16 %v37
  %v130 = vunpack.c.l.b16 %v38
  %v131 = vunpack.c.h.b16 %v38
  %v132 = vunpack.c.l.b16 %v39
  %v133 = vunpack.c.h.b16 %v39
  %v134 = vunpack.c.l.b16 %v40
  %v135 = vunpack.c.h.b16 %v40
  %v136 = vunpack.c.l.b16 %v41
  %v137 = vunpack.c.h.b16 %v41
  %v138 = vunpack.c.l.b16 %v42
  %v139 = vunpack.c.h.b16 %v42
  %v140 = vunpack.c.l.b16 %v43
  %v141 = vunpack.c.h.b16 %v43
  %v142 = vunpack.c.l.b16 %v44
  %v143 = vunpack.c.h.b16 %v44
  %v144 = vunpack.c.l.b16 %v45
  %v145 = vunpack.c.h.b16 %v45
  %v146 = vunpack.c.l.b16 %v46
  %v147 = vunpack.c.h.b16 %v46
  %v148 = vunpack.c.l.b16 %v47
  %v149 = vunpack.c.h.b16 %v47
  %v150 = vunpack.c.l.b16 %v48
  %v151 = vunpack.c.h.b16 %v48
  %v152 = vpack.c.b16 %v128, %v126
  %v153 = vpack.c.b16 %v129, %v127
  %v154 = vpack.c.b16 %v132, %v130
  %v155 = vpack.c.b16 %v133, %v131
  %v156 = vpack.c.b16 %v136, %v134
  %v157 = vpack.c.b16 %v137, %v135
  %v158 = vpack.c.b16 %v140, %v138
  %v159 = vpack.c.b16 %v141, %v139
  %v160 = vpack.c.b16 %v144, %v142
  %v161 = vpack.c.b16 %v145, %v143
  %v162 = vpack.c.b16 %v148, %v146
  %v163 = vpack.c.b16 %v149, %v147
  %v164 = vpack.c.b16 %v150, %v150
  %v165 = vpack.c.b16 %v151, %v151
  %v244 = vunpack.c.l.b16 %v49
  %v245 = vunpack.c.h.b16 %v49
  %v246 = vunpack.c.l.b16 %v50
  %v247 = vunpack.c.h.b16 %v50
  %v248 = vunpack.c.l.b16 %v51
  %v249 = vunpack.c.h.b16 %v51
  %v250 = vunpack.c.l.b16 %v52
  %v251 = vunpack.c.h.b16 %v52
  %v252 = vunpack.c.l.b16 %v53
  %v253 = vunpack.c.h.b16 %v53
  %v254 = vunpack.c.l.b16 %v54
  %v255 = vunpack.c.h.b16 %v54
  %v256 = vunpack.c.l.b16 %v55
  %v257 = vunpack.c.h.b16 %v55
  %v258 = vunpack.c.l.b16 %v56
  %v259 = vunpack.c.h.b16 %v56
  %v260 = vunpack.c.l.b16 %v57
  %v261 = vunpack.c.h.b16 %v57
  %v262 = vunpack.c.l.b16 %v58
  %v263 = vunpack.c.h.b16 %v58
  %v264 = vunpack.c.l.b16 %v59
  %v265 = vunpack.c.h.b16 %v59
  %v266 = vunpack.c.l.b16 %v60
  %v267 = vunpack.c.h.b16 %v60
  %v268 = vunpack.c.l.b16 %v61
  %v269 = vunpack.c.h.b16 %v61
  %v270 = vunpack.c.l.b16 %v62
  %v271 = vunpack.c.h.b16 %v62
  %v272 = vunpack.c.l.b16 %v63
  %v273 = vunpack.c.h.b16 %v63
  %v274 = vunpack.c.l.b16 %v64
  %v275 = vunpack.c.h.b16 %v64
  %v276 = vunpack.c.l.b16 %v65
  %v277 = vunpack.c.h.b16 %v65
  %v278 = vunpack.c.l.b16 %v66
  %v279 = vunpack.c.h.b16 %v66
  %v280 = vunpack.c.l.b16 %v67
  %v281 = vunpack.c.h.b16 %v67
  %v282 = vunpack.c.l.b16 %v68
  %v283 = vunpack.c.h.b16 %v68
  %v284 = vunpack.c.l.b16 %v69
  %v285 = vunpack.c.h.b16 %v69
  %v286 = vunpack.c.l.b16 %v70
  %v287 = vunpack.c.h.b16 %v70
  %v288 = vunpack.c.l.b16 %v71
  %v289 = vunpack.c.h.b16 %v71
  %v290 = vunpack.c.l.b16 %v72
  %v291 = vunpack.c.h.b16 %v72
  %v292 = vunpack.c.l.b16 %v73
  %v293 = vunpack.c.h.b16 %v73
  %v294 = vunpack.c.l.b16 %v74
  %v295 = vunpack.c.h.b16 %v74
  %v296 = vunpack.c.l.b16 %v75
  %v297 = vunpack.c.h.b16 %v75
  %v298 = vunpack.c.l.b16 %v76
  %v299 = vunpack.c.h.b16 %v76
  %v300 = vunpack.c.l.b16 %v77
  %v301 = vunpack.c.h.b16 %v77
  %v302 = vunpack.c.l.b16 %v78
  %v303 = vunpack.c.h.b16 %v78
  %v304 = vunpack.c.l.b16 %v79
  %v305 = vunpack.c.h.b16 %v79
  %v306 = vunpack.c.l.b16 %v80
  %v307 = vunpack.c.h.b16 %v80
  %v308 = vunpack.c.l.b16 %v81
  %v309 = vunpack.c.h.b16 %v81
  %v310 = vunpack.c.l.b16 %v82
  %v311 = vunpack.c.h.b16 %v82
  %v312 = vunpack.c.l.b16 %v83
  %v313 = vunpack.c.h.b16 %v83
  %v314 = vunpack.c.l.b16 %v84
  %v315 = vunpack.c.h.b16 %v84
  %v316 = vunpack.c.l.b16 %v85
  %v317 = vunpack.c.h.b16 %v85
  %v318 = vunpack.c.l.b16 %v86
  %v319 = vunpack.c.h.b16 %v86
  %v320 = vunpack.c.l.b16 %v87
  %v321 = vunpack.c.h.b16 %v87
  %v322 = vunpack.c.l.b16 %v88
  %v323 = vunpack.c.h.b16 %v88
  %v324 = vunpack.c.l.b16 %v89
  %v325 = vunpack.c.h.b16 %v89
  %v326 = vunpack.c.l.b16 %v90
  %v327 = vunpack.c.h.b16 %v90
  %v328 = vunpack.c.l.b16 %v91
  %v329 = vunpack.c.h.b16 %v91
  %v330 = vunpack.c.l.b16 %v92
  %v331 = vunpack.c.h.b16 %v92
  %v332 = vunpack.c.l.b16 %v93
  %v333 = vunpack.c.h.b16 %v93
  %v334 = vunpack.c.l.b16 %v94
  %v335 = vunpack.c.h.b16 %v94
  %v336 = vunpack.c.l.b16 %v95
  %v337 = vunpack.c.h.b16 %v95
  %v338 = vunpack.c.l.b16 %v96
  %v339 = vunpack.c.h.b16 %v96
  %v340 = vunpack.c.l.b16 %v97
  %v341 = vunpack.c.h.b16 %v97
  %v342 = vunpack.c.l.b16 %v98
  %v343 = vunpack.c.h.b16 %v98
  %v344 = vunpack.c.l.b16 %v99
  %v345 = vunpack.c.h.b16 %v99
  %v346 = vunpack.c.l.b16 %v100
  %v347 = vunpack.c.h.b16 %v100
  %v348 = vunpack.c.l.b16 %v101
  %v349 = vunpack.c.h.b16 %v101
  %v350 = vunpack.c.l.b16 %v102
  %v351 = vunpack.c.h.b16 %v102
  %v352 = vunpack.c.l.b16 %v103
  %v353 = vunpack.c.h.b16 %v103
  %v354 = vunpack.c.l.b16 %v104
  %v355 = vunpack.c.h.b16 %v104
  %v356 = vunpack.c.l.b16 %v105
  %v357 = vunpack.c.h.b16 %v105
  %v358 = vunpack.c.l.b16 %v106
  %v359 = vunpack.c.h.b16 %v106
  %v360 = vunpack.c.l.b16 %v107
  %v361 = vunpack.c.h.b16 %v107
  %v362 = vunpack.c.l.b16 %v108
  %v363 = vunpack.c.h.b16 %v108
  %v364 = vunpack.c.l.b16 %v109
  %v365 = vunpack.c.h.b16 %v109
  %v366 = vunpack.c.l.b16 %v110
  %v367 = vunpack.c.h.b16 %v110
  %v368 = vunpack.c.l.b16 %v111
  %v369 = vunpack.c.h.b16 %v111
  %v370 = vunpack.c.l.b16 %v112
  %v371 = vunpack.c.h.b16 %v112
  %v372 = vpack.c.b16 %v248, %v244
  %v373 = vpack.c.b16 %v249, %v245
  %v374 = vpack.c.b16 %v250, %v246
  %v375 = vpack.c.b16 %v251, %v247
  %v376 = vpack.c.b16 %v256, %v252
  %v377 = vpack.c.b16 %v257, %v253
  %v378 = vpack.c.b16 %v258, %v254
  %v379 = vpack.c.b16 %v259, %v255
  %v380 = vpack.c.b16 %v264, %v260
  %v381 = vpack.c.b16 %v265, %v261
  %v382 = vpack.c.b16 %v266, %v262
  %v383 = vpack.c.b16 %v267, %v263
  %v384 = vpack.c.b16 %v272, %v268
  %v385 = vpack.c.b16 %v273, %v269
  %v386 = vpack.c.b16 %v274, %v270
  %v387 = vpack.c.b16 %v275, %v271
  %v388 = vpack.c.b16 %v280, %v276
  %v389 = vpack.c.b16 %v281, %v277
  %v390 = vpack.c.b16 %v282, %v278
  %v391 = vpack.c.b16 %v283, %v279
  %v392 = vpack.c.b16 %v288, %v284
  %v393 = vpack.c.b16 %v289, %v285
  %v394 = vpack.c.b16 %v290, %v286
  %v395 = vpack.c.b16 %v291, %v287
  %v396 = vpack.c.b16 %v296, %v292
  %v397 = vpack.c.b16 %v297, %v293
  %v398 = vpack.c.b16 %v298, %v294
  %v399 = vpack.c.b16 %v299, %v295
  %v400 = vpack.c.b16 %v304, %v300
  %v401 = vpack.c.b16 %v305, %v301
  %v402 = vpack.c.b16 %v306, %v302
  %v403 = vpack.c.b16 %v307, %v303
  %v404 = vpack.c.b16 %v312, %v308
  %v405 = vpack.c.b16 %v313, %v309
  %v406 = vpack.c.b16 %v314, %v310
  %v407 = vpack.c.b16 %v315, %v311
  %v408 = vpack.c.b16 %v320, %v316
  %v409 = vpack.c.b16 %v321, %v317
  %v410 = vpack.c.b16 %v322, %v318
  %v411 = vpack.c.b16 %v323, %v319
  %v412 = vpack.c.b16 %v328, %v324
  %v413 = vpack.c.b16 %v329, %v325
  %v414 = vpack.c.b16 %v330, %v326
  %v415 = vpack.c.b16 %v331, %v327
  %v416 = vpack.c.b16 %v336, %v332
  %v417 = vpack.c.b16 %v337, %v333
  %v418 = vpack.c.b16 %v338, %v334
  %v419 = vpack.c.b16 %v339, %v335
  %v420 = vpack.c.b16 %v344, %v340
  %v421 = vpack.c.b16 %v345, %v341
  %v422 = vpack.c.b16 %v346, %v342
  %v423 = vpack.c.b16 %v347, %v343
  %v424 = vpack.c.b16 %v352, %v348
  %v425 = vpack.c.b16 %v353, %v349
  %v426 = vpack.c.b16 %v354, %v350
  %v427 = vpack.c.b16 %v355, %v351
  %v428 = vpack.c.b16 %v360, %v356
  %v429 = vpack.c.b16 %v361, %v357
  %v430 = vpack.c.b16 %v362, %v358
  %v431 = vpack.c.b16 %v363, %v359
  %v432 = vpack.c.b16 %v368, %v364
  %v433 = vpack.c.b16 %v369, %v365
  %v434 = vpack.c.b16 %v370, %v366
  %v435 = vpack.c.b16 %v371, %v367
  %500 = vmatprep.subr.bf16.mxu0 %v373
  %501 = vmatpush1.bf16.msra.mxu0 %v372
  %502 = vmatprep.subr.bf16.mxu0 %v377
  %503 = vmatpush1.bf16.msra.mxu0 %v376
  %504 = vmatprep.subr.bf16.mxu0 %v381
  %505 = vmatpush1.bf16.msra.mxu0 %v380
  %506 = vmatprep.subr.bf16.mxu0 %v385
  %507 = vmatpush1.bf16.msra.mxu0 %v384
  %508 = vmatprep.subr.bf16.mxu0 %v389
  %509 = vmatpush1.bf16.msra.mxu0 %v388
  %510 = vmatprep.subr.bf16.mxu0 %v393
  %511 = vmatpush1.bf16.msra.mxu0 %v392
  %512 = vmatprep.subr.bf16.mxu0 %v397
  %513 = vmatpush1.bf16.msra.mxu0 %v396
  %514 = vmatprep.subr.bf16.mxu0 %v401
  %515 = vmatpush1.bf16.msra.mxu0 %v400
  %516 = vmatprep.subr.bf16.mxu0 %v405
  %517 = vmatpush1.bf16.msra.mxu0 %v404
  %518 = vmatprep.subr.bf16.mxu0 %v409
  %519 = vmatpush1.bf16.msra.mxu0 %v408
  %520 = vmatprep.subr.bf16.mxu0 %v413
  %521 = vmatpush1.bf16.msra.mxu0 %v412
  %522 = vmatprep.subr.bf16.mxu0 %v417
  %523 = vmatpush1.bf16.msra.mxu0 %v416
  %524 = vmatprep.subr.bf16.mxu0 %v421
  %525 = vmatpush1.bf16.msra.mxu0 %v420
  %526 = vmatprep.subr.bf16.mxu0 %v425
  %527 = vmatpush1.bf16.msra.mxu0 %v424
  %528 = vmatprep.subr.bf16.mxu0 %v429
  %529 = vmatpush1.bf16.msra.mxu0 %v428
  %530 = vmatprep.subr.bf16.mxu0 %v433
  %531 = vmatpush1.bf16.msra.mxu0 %v432
  %532 = vmatprep.mubr.bf16.mxu0 %v153
  %533 = vmatmul.mubr.bf16.gmra.mrb[0].mxu0 %v152
  %v534 = vpop.f32.mrb[0].mxu0
  %v535 = vadd.f32 0.0, %v534
  %v536 = vpop.f32.mrb[0].mxu0
  %v537 = vadd.f32 0.0, %v536
  %v538 = vpop.f32.mrb[0].mxu0
  %v539 = vadd.f32 0.0, %v538
  %v540 = vpop.f32.mrb[0].mxu0
  %v541 = vadd.f32 0.0, %v540
  %542 = vmatprep.mubr.bf16.mxu0 %v155
  %543 = vmatmul.mubr.bf16.gmra.mrb[0].mxu0 %v154
  %v544 = vpop.f32.mrb[0].mxu0
  %v545 = vadd.f32 0.0, %v544
  %v546 = vpop.f32.mrb[0].mxu0
  %v547 = vadd.f32 0.0, %v546
  %v548 = vpop.f32.mrb[0].mxu0
  %v549 = vadd.f32 0.0, %v548
  %v550 = vpop.f32.mrb[0].mxu0
  %v551 = vadd.f32 0.0, %v550
  %552 = vmatprep.mubr.bf16.mxu0 %v157
  %553 = vmatmul.mubr.bf16.gmra.mrb[0].mxu0 %v156
  %v554 = vpop.f32.mrb[0].mxu0
  %v555 = vadd.f32 0.0, %v554
  %v556 = vpop.f32.mrb[0].mxu0
  %v557 = vadd.f32 0.0, %v556
  %v558 = vpop.f32.mrb[0].mxu0
  %v559 = vadd.f32 0.0, %v558
  %v560 = vpop.f32.mrb[0].mxu0
  %v561 = vadd.f32 0.0, %v560
  %562 = vmatprep.mubr.bf16.mxu0 %v159
  %563 = vmatmul.mubr.bf16.gmra.mrb[0].mxu0 %v158
  %v564 = vpop.f32.mrb[0].mxu0
  %v565 = vadd.f32 0.0, %v564
  %v566 = vpop.f32.mrb[0].mxu0
  %v567 = vadd.f32 0.0, %v566
  %v568 = vpop.f32.mrb[0].mxu0
  %v569 = vadd.f32 0.0, %v568
  %v570 = vpop.f32.mrb[0].mxu0
  %v571 = vadd.f32 0.0, %v570
  %572 = vmatprep.mubr.bf16.mxu0 %v161
  %573 = vmatmul.mubr.bf16.gmra.mrb[0].mxu0 %v160
  %v574 = vpop.f32.mrb[0].mxu0
  %v575 = vadd.f32 0.0, %v574
  %v576 = vpop.f32.mrb[0].mxu0
  %v577 = vadd.f32 0.0, %v576
  %v578 = vpop.f32.mrb[0].mxu0
  %v579 = vadd.f32 0.0, %v578
  %v580 = vpop.f32.mrb[0].mxu0
  %v581 = vadd.f32 0.0, %v580
  %582 = vmatprep.mubr.bf16.mxu0 %v163
  %583 = vmatmul.mubr.bf16.gmra.mrb[0].mxu0 %v162
  %v584 = vpop.f32.mrb[0].mxu0
  %v585 = vadd.f32 0.0, %v584
  %v586 = vpop.f32.mrb[0].mxu0
  %v587 = vadd.f32 0.0, %v586
  %v588 = vpop.f32.mrb[0].mxu0
  %v589 = vadd.f32 0.0, %v588
  %v590 = vpop.f32.mrb[0].mxu0
  %v591 = vadd.f32 0.0, %v590
  %592 = vmatprep.mubr.bf16.mxu0 %v165
  %593 = vmatmul.mubr.bf16.gmra.mrb[0].mxu0 %v164
  %v594 = vpop.f32.mrb[0].mxu0
  %v595 = vadd.f32 0.0, %v594
  %v596 = vpop.f32.mrb[0].mxu0
  %v597 = vadd.f32 0.0, %v596
  %v598 = vpop.f32.mrb[0].mxu0
  %v599 = vpop.f32.mrb[0].mxu0
  %600 = vdwg.mxu0
  %601 = vmatprep.subr.bf16.mxu0 %v375
  %602 = vmatpush1.bf16.msra.mxu0 %v374
  %603 = vmatprep.subr.bf16.mxu0 %v379
  %604 = vmatpush1.bf16.msra.mxu0 %v378
  %605 = vmatprep.subr.bf16.mxu0 %v383
  %606 = vmatpush1.bf16.msra.mxu0 %v382
  %607 = vmatprep.subr.bf16.mxu0 %v387
  %608 = vmatpush1.bf16.msra.mxu0 %v386
  %609 = vmatprep.subr.bf16.mxu0 %v391
  %610 = vmatpush1.bf16.msra.mxu0 %v390
  %611 = vmatprep.subr.bf16.mxu0 %v395
  %612 = vmatpush1.bf16.msra.mxu0 %v394
  %613 = vmatprep.subr.bf16.mxu0 %v399
  %614 = vmatpush1.bf16.msra.mxu0 %v398
  %615 = vmatprep.subr.bf16.mxu0 %v403
  %616 = vmatpush1.bf16.msra.mxu0 %v402
  %617 = vmatprep.subr.bf16.mxu0 %v407
  %618 = vmatpush1.bf16.msra.mxu0 %v406
  %619 = vmatprep.subr.bf16.mxu0 %v411
  %620 = vmatpush1.bf16.msra.mxu0 %v410
  %621 = vmatprep.subr.bf16.mxu0 %v415
  %622 = vmatpush1.bf16.msra.mxu0 %v414
  %623 = vmatprep.subr.bf16.mxu0 %v419
  %624 = vmatpush1.bf16.msra.mxu0 %v418
  %625 = vmatprep.subr.bf16.mxu0 %v423
  %626 = vmatpush1.bf16.msra.mxu0 %v422
  %627 = vmatprep.subr.bf16.mxu0 %v427
  %628 = vmatpush1.bf16.msra.mxu0 %v426
  %629 = vmatprep.subr.bf16.mxu0 %v431
  %630 = vmatpush1.bf16.msra.mxu0 %v430
  %631 = vmatprep.subr.bf16.mxu0 %v435
  %632 = vmatpush1.bf16.msra.mxu0 %v434
  %633 = vmatprep.mubr.bf16.mxu0 %v153
  %634 = vmatmul.mubr.bf16.gmra.mrb[0].mxu0 %v152
  %v635 = vpop.f32.mrb[0].mxu0
  %v636 = vadd.f32 0.0, %v635
  %v637 = vpop.f32.mrb[0].mxu0
  %v638 = vadd.f32 0.0, %v637
  %v639 = vpop.f32.mrb[0].mxu0
  %v640 = vadd.f32 0.0, %v639
  %v641 = vpop.f32.mrb[0].mxu0
  %v642 = vadd.f32 0.0, %v641
  %643 = vmatprep.mubr.bf16.mxu0 %v155
  %644 = vmatmul.mubr.bf16.gmra.mrb[0].mxu0 %v154
  %v645 = vpop.f32.mrb[0].mxu0
  %v646 = vadd.f32 0.0, %v645
  %v647 = vpop.f32.mrb[0].mxu0
  %v648 = vadd.f32 0.0, %v647
  %v649 = vpop.f32.mrb[0].mxu0
  %v650 = vadd.f32 0.0, %v649
  %v651 = vpop.f32.mrb[0].mxu0
  %v652 = vadd.f32 0.0, %v651
  %653 = vmatprep.mubr.bf16.mxu0 %v157
  %654 = vmatmul.mubr.bf16.gmra.mrb[0].mxu0 %v156
  %v655 = vpop.f32.mrb[0].mxu0
  %v656 = vadd.f32 0.0, %v655
  %v657 = vpop.f32.mrb[0].mxu0
  %v658 = vadd.f32 0.0, %v657
  %v659 = vpop.f32.mrb[0].mxu0
  %v660 = vadd.f32 0.0, %v659
  %v661 = vpop.f32.mrb[0].mxu0
  %v662 = vadd.f32 0.0, %v661
  %663 = vmatprep.mubr.bf16.mxu0 %v159
  %664 = vmatmul.mubr.bf16.gmra.mrb[0].mxu0 %v158
  %v665 = vpop.f32.mrb[0].mxu0
  %v666 = vadd.f32 0.0, %v665
  %v667 = vpop.f32.mrb[0].mxu0
  %v668 = vadd.f32 0.0, %v667
  %v669 = vpop.f32.mrb[0].mxu0
  %v670 = vadd.f32 0.0, %v669
  %v671 = vpop.f32.mrb[0].mxu0
  %v672 = vadd.f32 0.0, %v671
  %673 = vmatprep.mubr.bf16.mxu0 %v161
  %674 = vmatmul.mubr.bf16.gmra.mrb[0].mxu0 %v160
  %v675 = vpop.f32.mrb[0].mxu0
  %v676 = vadd.f32 0.0, %v675
  %v677 = vpop.f32.mrb[0].mxu0
  %v678 = vadd.f32 0.0, %v677
  %v679 = vpop.f32.mrb[0].mxu0
  %v680 = vadd.f32 0.0, %v679
  %v681 = vpop.f32.mrb[0].mxu0
  %v682 = vadd.f32 0.0, %v681
  %683 = vmatprep.mubr.bf16.mxu0 %v163
  %684 = vmatmul.mubr.bf16.gmra.mrb[0].mxu0 %v162
  %v685 = vpop.f32.mrb[0].mxu0
  %v686 = vadd.f32 0.0, %v685
  %v687 = vpop.f32.mrb[0].mxu0
  %v688 = vadd.f32 0.0, %v687
  %v689 = vpop.f32.mrb[0].mxu0
  %v690 = vadd.f32 0.0, %v689
  %v691 = vpop.f32.mrb[0].mxu0
  %v692 = vadd.f32 0.0, %v691
  %693 = vmatprep.mubr.bf16.mxu0 %v165
  %694 = vmatmul.mubr.bf16.gmra.mrb[0].mxu0 %v164
  %v695 = vpop.f32.mrb[0].mxu0
  %v696 = vadd.f32 0.0, %v695
  %v697 = vpop.f32.mrb[0].mxu0
  %v698 = vadd.f32 0.0, %v697
  %v699 = vpop.f32.mrb[0].mxu0
  %v700 = vpop.f32.mrb[0].mxu0
  %701 = vdwg.mxu0
  %vm702 = vcmp.ge.f32.partialorder %v535, 0.0
  %vm703 = vcmp.ge.f32.partialorder %v537, 0.0
  %vm704 = vcmp.ge.f32.partialorder %v636, 0.0
  %vm705 = vcmp.ge.f32.partialorder %v638, 0.0
  %vm706 = vcmp.ge.f32.partialorder %v539, 0.0
  %vm707 = vcmp.ge.f32.partialorder %v541, 0.0
  %vm708 = vcmp.ge.f32.partialorder %v640, 0.0
  %vm709 = vcmp.ge.f32.partialorder %v642, 0.0
  %vm710 = vcmp.ge.f32.partialorder %v545, 0.0
  %vm711 = vcmp.ge.f32.partialorder %v547, 0.0
  %vm712 = vcmp.ge.f32.partialorder %v646, 0.0
  %vm713 = vcmp.ge.f32.partialorder %v648, 0.0
  %vm714 = vcmp.ge.f32.partialorder %v549, 0.0
  %vm715 = vcmp.ge.f32.partialorder %v551, 0.0
  %vm716 = vcmp.ge.f32.partialorder %v650, 0.0
  %vm717 = vcmp.ge.f32.partialorder %v652, 0.0
  %vm718 = vcmp.ge.f32.partialorder %v555, 0.0
  %vm719 = vcmp.ge.f32.partialorder %v557, 0.0
  %vm720 = vcmp.ge.f32.partialorder %v656, 0.0
  %vm721 = vcmp.ge.f32.partialorder %v658, 0.0
  %vm722 = vcmp.ge.f32.partialorder %v559, 0.0
  %vm723 = vcmp.ge.f32.partialorder %v561, 0.0
  %vm724 = vcmp.ge.f32.partialorder %v660, 0.0
  %vm725 = vcmp.ge.f32.partialorder %v662, 0.0
  %vm726 = vcmp.ge.f32.partialorder %v565, 0.0
  %vm727 = vcmp.ge.f32.partialorder %v567, 0.0
  %vm728 = vcmp.ge.f32.partialorder %v666, 0.0
  %vm729 = vcmp.ge.f32.partialorder %v668, 0.0
  %vm730 = vcmp.ge.f32.partialorder %v569, 0.0
  %vm731 = vcmp.ge.f32.partialorder %v571, 0.0
  %vm732 = vcmp.ge.f32.partialorder %v670, 0.0
  %vm733 = vcmp.ge.f32.partialorder %v672, 0.0
  %vm734 = vcmp.ge.f32.partialorder %v575, 0.0
  %vm735 = vcmp.ge.f32.partialorder %v577, 0.0
  %vm736 = vcmp.ge.f32.partialorder %v676, 0.0
  %vm737 = vcmp.ge.f32.partialorder %v678, 0.0
  %vm738 = vcmp.ge.f32.partialorder %v579, 0.0
  %vm739 = vcmp.ge.f32.partialorder %v581, 0.0
  %vm740 = vcmp.ge.f32.partialorder %v680, 0.0
  %vm741 = vcmp.ge.f32.partialorder %v682, 0.0
  %vm742 = vcmp.ge.f32.partialorder %v585, 0.0
  %vm743 = vcmp.ge.f32.partialorder %v587, 0.0
  %vm744 = vcmp.ge.f32.partialorder %v686, 0.0
  %vm745 = vcmp.ge.f32.partialorder %v688, 0.0
  %vm746 = vcmp.ge.f32.partialorder %v589, 0.0
  %vm747 = vcmp.ge.f32.partialorder %v591, 0.0
  %vm748 = vcmp.ge.f32.partialorder %v690, 0.0
  %vm749 = vcmp.ge.f32.partialorder %v692, 0.0
  %vm750 = vcmp.ge.f32.partialorder %v595, 0.0
  %vm751 = vcmp.ge.f32.partialorder %v597, 0.0
  %vm752 = vcmp.ge.f32.partialorder %v696, 0.0
  %vm753 = vcmp.ge.f32.partialorder %v698, 0.0
  %v754 = vmul.f32 %v535, 0.2
  %v755 = vmul.f32 %v537, 0.2
  %v756 = vmul.f32 %v636, 0.2
  %v757 = vmul.f32 %v638, 0.2
  %v758 = vmul.f32 %v539, 0.2
  %v759 = vmul.f32 %v541, 0.2
  %v760 = vmul.f32 %v640, 0.2
  %v761 = vmul.f32 %v642, 0.2
  %v762 = vmul.f32 %v545, 0.2
  %v763 = vmul.f32 %v547, 0.2
  %v764 = vmul.f32 %v646, 0.2
  %v765 = vmul.f32 %v648, 0.2
  %v766 = vmul.f32 %v549, 0.2
  %v767 = vmul.f32 %v551, 0.2
  %v768 = vmul.f32 %v650, 0.2
  %v769 = vmul.f32 %v652, 0.2
  %v770 = vmul.f32 %v555, 0.2
  %v771 = vmul.f32 %v557, 0.2
  %v772 = vmul.f32 %v656, 0.2
  %v773 = vmul.f32 %v658, 0.2
  %v774 = vmul.f32 %v559, 0.2
  %v775 = vmul.f32 %v561, 0.2
  %v776 = vmul.f32 %v660, 0.2
  %v777 = vmul.f32 %v662, 0.2
  %v778 = vmul.f32 %v565, 0.2
  %v779 = vmul.f32 %v567, 0.2
  %v780 = vmul.f32 %v666, 0.2
  %v781 = vmul.f32 %v668, 0.2
  %v782 = vmul.f32 %v569, 0.2
  %v783 = vmul.f32 %v571, 0.2
  %v784 = vmul.f32 %v670, 0.2
  %v785 = vmul.f32 %v672, 0.2
  %v786 = vmul.f32 %v575, 0.2
  %v787 = vmul.f32 %v577, 0.2
  %v788 = vmul.f32 %v676, 0.2
  %v789 = vmul.f32 %v678, 0.2
  %v790 = vmul.f32 %v579, 0.2
  %v791 = vmul.f32 %v581, 0.2
  %v792 = vmul.f32 %v680, 0.2
  %v793 = vmul.f32 %v682, 0.2
  %v794 = vmul.f32 %v585, 0.2
  %v795 = vmul.f32 %v587, 0.2
  %v796 = vmul.f32 %v686, 0.2
  %v797 = vmul.f32 %v688, 0.2
  %v798 = vmul.f32 %v589, 0.2
  %v799 = vmul.f32 %v591, 0.2
  %v800 = vmul.f32 %v690, 0.2
  %v801 = vmul.f32 %v692, 0.2
  %v802 = vmul.f32 %v595, 0.2
  %v803 = vmul.f32 %v597, 0.2
  %v804 = vmul.f32 %v696, 0.2
  %v805 = vmul.f32 %v698, 0.2
  %v806 = vsel %vm702, %v535, %v754
  %v807 = vsel %vm703, %v537, %v755
  %v808 = vsel %vm704, %v636, %v756
  %v809 = vsel %vm705, %v638, %v757
  %v810 = vsel %vm706, %v539, %v758
  %v811 = vsel %vm707, %v541, %v759
  %v812 = vsel %vm708, %v640, %v760
  %v813 = vsel %vm709, %v642, %v761
  %v814 = vsel %vm710, %v545, %v762
  %v815 = vsel %vm711, %v547, %v763
  %v816 = vsel %vm712, %v646, %v764
  %v817 = vsel %vm713, %v648, %v765
  %v818 = vsel %vm714, %v549, %v766
  %v819 = vsel %vm715, %v551, %v767
  %v820 = vsel %vm716, %v650, %v768
  %v821 = vsel %vm717, %v652, %v769
  %v822 = vsel %vm718, %v555, %v770
  %v823 = vsel %vm719, %v557, %v771
  %v824 = vsel %vm720, %v656, %v772
  %v825 = vsel %vm721, %v658, %v773
  %v826 = vsel %vm722, %v559, %v774
  %v827 = vsel %vm723, %v561, %v775
  %v828 = vsel %vm724, %v660, %v776
  %v829 = vsel %vm725, %v662, %v777
  %v830 = vsel %vm726, %v565, %v778
  %v831 = vsel %vm727, %v567, %v779
  %v832 = vsel %vm728, %v666, %v780
  %v833 = vsel %vm729, %v668, %v781
  %v834 = vsel %vm730, %v569, %v782
  %v835 = vsel %vm731, %v571, %v783
  %v836 = vsel %vm732, %v670, %v784
  %v837 = vsel %vm733, %v672, %v785
  %v838 = vsel %vm734, %v575, %v786
  %v839 = vsel %vm735, %v577, %v787
  %v840 = vsel %vm736, %v676, %v788
  %v841 = vsel %vm737, %v678, %v789
  %v842 = vsel %vm738, %v579, %v790
  %v843 = vsel %vm739, %v581, %v791
  %v844 = vsel %vm740, %v680, %v792
  %v845 = vsel %vm741, %v682, %v793
  %v846 = vsel %vm742, %v585, %v794
  %v847 = vsel %vm743, %v587, %v795
  %v848 = vsel %vm744, %v686, %v796
  %v849 = vsel %vm745, %v688, %v797
  %v850 = vsel %vm746, %v589, %v798
  %v851 = vsel %vm747, %v591, %v799
  %v852 = vsel %vm748, %v690, %v800
  %v853 = vsel %vm749, %v692, %v801
  %v854 = vsel %vm750, %v595, %v802
  %v855 = vsel %vm751, %v597, %v803
  %v856 = vsel %vm752, %v696, %v804
  %v857 = vsel %vm753, %v698, %v805
  %v858 = vpack.c.bf16 %v810, %v806
  %v859 = vpack.c.bf16 %v811, %v807
  %v860 = vpack.c.bf16 %v812, %v808
  %v861 = vpack.c.bf16 %v813, %v809
  %v862 = vpack.c.bf16 %v818, %v814
  %v863 = vpack.c.bf16 %v819, %v815
  %v864 = vpack.c.bf16 %v820, %v816
  %v865 = vpack.c.bf16 %v821, %v817
  %v866 = vpack.c.bf16 %v826, %v822
  %v867 = vpack.c.bf16 %v827, %v823
  %v868 = vpack.c.bf16 %v828, %v824
  %v869 = vpack.c.bf16 %v829, %v825
  %v870 = vpack.c.bf16 %v834, %v830
  %v871 = vpack.c.bf16 %v835, %v831
  %v872 = vpack.c.bf16 %v836, %v832
  %v873 = vpack.c.bf16 %v837, %v833
  %v874 = vpack.c.bf16 %v842, %v838
  %v875 = vpack.c.bf16 %v843, %v839
  %v876 = vpack.c.bf16 %v844, %v840
  %v877 = vpack.c.bf16 %v845, %v841
  %v878 = vpack.c.bf16 %v850, %v846
  %v879 = vpack.c.bf16 %v851, %v847
  %v880 = vpack.c.bf16 %v852, %v848
  %v881 = vpack.c.bf16 %v853, %v849
  %v882 = vpack.c.bf16 %v854, %v854
  %v883 = vpack.c.bf16 %v855, %v855
  %v884 = vpack.c.bf16 %v856, %v856
  %v885 = vpack.c.bf16 %v857, %v857
  %v886 = vld [vmem:[%s2] sm:$0xf]
  %v887 = vld [vmem:[%s2 + $0x4] sm:$0xf]
  %v888 = vld [vmem:[%s2 + $0x8] sm:$0xf]
  %v889 = vld [vmem:[%s2 + $0xc] sm:$0xf]
  %v890 = vld [vmem:[%s2 + $0x10] sm:$0xf]
  %v891 = vld [vmem:[%s2 + $0x14] sm:$0xf]
  %v892 = vld [vmem:[%s2 + $0x18] sm:$0xf]
  %v893 = vld [vmem:[%s2 + $0x1c] sm:$0xf]
  %v894 = vld [vmem:[%s2 + $0x20] sm:$0xf]
  %v895 = vld [vmem:[%s2 + $0x24] sm:$0xf]
  %v896 = vld [vmem:[%s2 + $0x28] sm:$0xf]
  %v897 = vld [vmem:[%s2 + $0x2c] sm:$0xf]
  %v898 = vld [vmem:[%s2 + $0x30] sm:$0xf]
  %v899 = vld [vmem:[%s2 + $0x34] sm:$0xf]
  %v900 = vld [vmem:[%s2 + $0x38] sm:$0xf]
  %v901 = vld [vmem:[%s2 + $0x3c] sm:$0xf]
  %v902 = vld [vmem:[%s2 + $0x40] sm:$0xf]
  %v903 = vld [vmem:[%s2 + $0x44] sm:$0xf]
  %v904 = vld [vmem:[%s2 + $0x48] sm:$0xf]
  %v905 = vld [vmem:[%s2 + $0x4c] sm:$0xf]
  %v906 = vld [vmem:[%s2 + $0x50] sm:$0xf]
  %v907 = vld [vmem:[%s2 + $0x54] sm:$0xf]
  %v908 = vld [vmem:[%s2 + $0x58] sm:$0xf]
  %v909 = vld [vmem:[%s2 + $0x5c] sm:$0xf]
  %v910 = vld [vmem:[%s2 + $0x60] sm:$0xf]
  %v911 = vld [vmem:[%s2 + $0x64] sm:$0xf]
  %v912 = vld [vmem:[%s2 + $0x68] sm:$0xf]
  %v913 = vld [vmem:[%s2 + $0x6c] sm:$0xf]
  %v914 = vld [vmem:[%s2 + $0x70] sm:$0xf]
  %v915 = vld [vmem:[%s2 + $0x74] sm:$0xf]
  %v916 = vld [vmem:[%s2 + $0x78] sm:$0xf]
  %v917 = vld [vmem:[%s2 + $0x7c] sm:$0xf]
  %v918 = vld [vmem:[%s2 + $0x80] sm:$0xf]
  %v919 = vld [vmem:[%s2 + $0x84] sm:$0xf]
  %v920 = vld [vmem:[%s2 + $0x88] sm:$0xf]
  %v921 = vld [vmem:[%s2 + $0x8c] sm:$0xf]
  %v922 = vld [vmem:[%s2 + $0x90] sm:$0xf]
  %v923 = vld [vmem:[%s2 + $0x94] sm:$0xf]
  %v924 = vld [vmem:[%s2 + $0x98] sm:$0xf]
  %v925 = vld [vmem:[%s2 + $0x9c] sm:$0xf]
  %v926 = vld [vmem:[%s2 + $0xa0] sm:$0xf]
  %v927 = vld [vmem:[%s2 + $0xa4] sm:$0xf]
  %v928 = vld [vmem:[%s2 + $0xa8] sm:$0xf]
  %v929 = vld [vmem:[%s2 + $0xac] sm:$0xf]
  %v930 = vld [vmem:[%s2 + $0xb0] sm:$0xf]
  %v931 = vld [vmem:[%s2 + $0xb4] sm:$0xf]
  %v932 = vld [vmem:[%s2 + $0xb8] sm:$0xf]
  %v933 = vld [vmem:[%s2 + $0xbc] sm:$0xf]
  %v934 = vld [vmem:[%s2 + $0xc0] sm:$0xf]
  %v935 = vld [vmem:[%s2 + $0xc4] sm:$0xf]
  %v936 = vld [vmem:[%s2 + $0xc8] sm:$0xf]
  %v937 = vld [vmem:[%s2 + $0xcc] sm:$0xf]
  %v938 = vld [vmem:[%s2 + $0xd0] sm:$0xf]
  %v939 = vld [vmem:[%s2 + $0xd4] sm:$0xf]
  %v940 = vld [vmem:[%s2 + $0xd8] sm:$0xf]
  %v941 = vld [vmem:[%s2 + $0xdc] sm:$0xf]
  %v942 = vld [vmem:[%s2 + $0xe0] sm:$0xf]
  %v943 = vld [vmem:[%s2 + $0xe4] sm:$0xf]
  %v944 = vld [vmem:[%s2 + $0xe8] sm:$0xf]
  %v945 = vld [vmem:[%s2 + $0xec] sm:$0xf]
  %v946 = vld [vmem:[%s2 + $0xf0] sm:$0xf]
  %v947 = vld [vmem:[%s2 + $0xf4] sm:$0xf]
  %v948 = vld [vmem:[%s2 + $0xf8] sm:$0xf]
  %v949 = vld [vmem:[%s2 + $0xfc] sm:$0xf]
  %v1014 = vunpack.c.l.b16 %v886
  %v1015 = vunpack.c.l.b16 %v887
  %v1016 = vunpack.c.l.b16 %v888
  %v1017 = vunpack.c.l.b16 %v889
  %v1018 = vunpack.c.l.b16 %v890
  %v1019 = vunpack.c.l.b16 %v891
  %v1020 = vunpack.c.l.b16 %v892
  %v1021 = vunpack.c.l.b16 %v893
  %v1022 = vunpack.c.l.b16 %v894
  %v1023 = vunpack.c.l.b16 %v895
  %v1024 = vunpack.c.l.b16 %v896
  %v1025 = vunpack.c.l.b16 %v897
  %v1026 = vunpack.c.l.b16 %v898
  %v1027 = vunpack.c.l.b16 %v899
  %v1028 = vunpack.c.l.b16 %v900
  %v1029 = vunpack.c.l.b16 %v901
  %v1030 = vunpack.c.l.b16 %v902
  %v1031 = vunpack.c.l.b16 %v903
  %v1032 = vunpack.c.l.b16 %v904
  %v1033 = vunpack.c.l.b16 %v905
  %v1034 = vunpack.c.l.b16 %v906
  %v1035 = vunpack.c.l.b16 %v907
  %v1036 = vunpack.c.l.b16 %v908
  %v1037 = vunpack.c.l.b16 %v909
  %v1038 = vunpack.c.l.b16 %v910
  %v1039 = vunpack.c.l.b16 %v911
  %v1040 = vunpack.c.l.b16 %v912
  %v1041 = vunpack.c.l.b16 %v913
  %v1042 = vunpack.c.l.b16 %v914
  %v1043 = vunpack.c.l.b16 %v915
  %v1044 = vunpack.c.l.b16 %v916
  %v1045 = vunpack.c.l.b16 %v917
  %v1046 = vunpack.c.l.b16 %v918
  %v1047 = vunpack.c.l.b16 %v919
  %v1048 = vunpack.c.l.b16 %v920
  %v1049 = vunpack.c.l.b16 %v921
  %v1050 = vunpack.c.l.b16 %v922
  %v1051 = vunpack.c.l.b16 %v923
  %v1052 = vunpack.c.l.b16 %v924
  %v1053 = vunpack.c.l.b16 %v925
  %v1054 = vunpack.c.l.b16 %v926
  %v1055 = vunpack.c.l.b16 %v927
  %v1056 = vunpack.c.l.b16 %v928
  %v1057 = vunpack.c.l.b16 %v929
  %v1058 = vunpack.c.l.b16 %v930
  %v1059 = vunpack.c.l.b16 %v931
  %v1060 = vunpack.c.l.b16 %v932
  %v1061 = vunpack.c.l.b16 %v933
  %v1062 = vunpack.c.l.b16 %v934
  %v1063 = vunpack.c.l.b16 %v935
  %v1064 = vunpack.c.l.b16 %v936
  %v1065 = vunpack.c.l.b16 %v937
  %v1066 = vunpack.c.l.b16 %v938
  %v1067 = vunpack.c.l.b16 %v939
  %v1068 = vunpack.c.l.b16 %v940
  %v1069 = vunpack.c.l.b16 %v941
  %v1070 = vunpack.c.l.b16 %v942
  %v1071 = vunpack.c.l.b16 %v943
  %v1072 = vunpack.c.l.b16 %v944
  %v1073 = vunpack.c.l.b16 %v945
  %v1074 = vunpack.c.l.b16 %v946
  %v1075 = vunpack.c.l.b16 %v947
  %v1076 = vunpack.c.l.b16 %v948
  %v1077 = vunpack.c.l.b16 %v949
  %v1078 = vpack.c.b16 %v1015, %v1014
  %v1079 = vpack.c.b16 %v1017, %v1016
  %v1080 = vpack.c.b16 %v1019, %v1018
  %v1081 = vpack.c.b16 %v1021, %v1020
  %v1082 = vpack.c.b16 %v1023, %v1022
  %v1083 = vpack.c.b16 %v1025, %v1024
  %v1084 = vpack.c.b16 %v1027, %v1026
  %v1085 = vpack.c.b16 %v1029, %v1028
  %v1086 = vpack.c.b16 %v1031, %v1030
  %v1087 = vpack.c.b16 %v1033, %v1032
  %v1088 = vpack.c.b16 %v1035, %v1034
  %v1089 = vpack.c.b16 %v1037, %v1036
  %v1090 = vpack.c.b16 %v1039, %v1038
  %v1091 = vpack.c.b16 %v1041, %v1040
  %v1092 = vpack.c.b16 %v1043, %v1042
  %v1093 = vpack.c.b16 %v1045, %v1044
  %v1094 = vpack.c.b16 %v1047, %v1046
  %v1095 = vpack.c.b16 %v1049, %v1048
  %v1096 = vpack.c.b16 %v1051, %v1050
  %v1097 = vpack.c.b16 %v1053, %v1052
  %v1098 = vpack.c.b16 %v1055, %v1054
  %v1099 = vpack.c.b16 %v1057, %v1056
  %v1100 = vpack.c.b16 %v1059, %v1058
  %v1101 = vpack.c.b16 %v1061, %v1060
  %v1102 = vpack.c.b16 %v1063, %v1062
  %v1103 = vpack.c.b16 %v1065, %v1064
  %v1104 = vpack.c.b16 %v1067, %v1066
  %v1105 = vpack.c.b16 %v1069, %v1068
  %v1106 = vpack.c.b16 %v1071, %v1070
  %v1107 = vpack.c.b16 %v1073, %v1072
  %v1108 = vpack.c.b16 %v1075, %v1074
  %v1109 = vpack.c.b16 %v1077, %v1076
  %1142 = vmatprep.subr.bf16.mxu0 0
  %1143 = vmatpush1.bf16.msra.mxu0 %v1078
  %1144 = vmatprep.subr.bf16.mxu0 0
  %1145 = vmatpush1.bf16.msra.mxu0 %v1079
  %1146 = vmatprep.subr.bf16.mxu0 0
  %1147 = vmatpush1.bf16.msra.mxu0 %v1080
  %1148 = vmatprep.subr.bf16.mxu0 0
  %1149 = vmatpush1.bf16.msra.mxu0 %v1081
  %1150 = vmatprep.subr.bf16.mxu0 0
  %1151 = vmatpush1.bf16.msra.mxu0 %v1082
  %1152 = vmatprep.subr.bf16.mxu0 0
  %1153 = vmatpush1.bf16.msra.mxu0 %v1083
  %1154 = vmatprep.subr.bf16.mxu0 0
  %1155 = vmatpush1.bf16.msra.mxu0 %v1084
  %1156 = vmatprep.subr.bf16.mxu0 0
  %1157 = vmatpush1.bf16.msra.mxu0 %v1085
  %1158 = vmatprep.subr.bf16.mxu0 0
  %1159 = vmatpush1.bf16.msra.mxu0 %v1086
  %1160 = vmatprep.subr.bf16.mxu0 0
  %1161 = vmatpush1.bf16.msra.mxu0 %v1087
  %1162 = vmatprep.subr.bf16.mxu0 0
  %1163 = vmatpush1.bf16.msra.mxu0 %v1088
  %1164 = vmatprep.subr.bf16.mxu0 0
  %1165 = vmatpush1.bf16.msra.mxu0 %v1089
  %1166 = vmatprep.subr.bf16.mxu0 0
  %1167 = vmatpush1.bf16.msra.mxu0 %v1090
  %1168 = vmatprep.subr.bf16.mxu0 0
  %1169 = vmatpush1.bf16.msra.mxu0 %v1091
  %1170 = vmatprep.subr.bf16.mxu0 0
  %1171 = vmatpush1.bf16.msra.mxu0 %v1092
  %1172 = vmatprep.subr.bf16.mxu0 0
  %1173 = vmatpush1.bf16.msra.mxu0 %v1093
  %1174 = vmatprep.mubr.bf16.mxu0 %v859
  %1175 = vmatmul.mubr.bf16.gmra.mrb[0].mxu0 %v858
  %v1176 = vpop.f32.mrb[0].mxu0
  %v1177 = vadd.f32 0.0, %v1176
  %v1178 = vpop.f32.mrb[0].mxu0
  %v1179 = vpop.f32.mrb[0].mxu0
  %v1180 = vadd.f32 0.0, %v1179
  %v1181 = vpop.f32.mrb[0].mxu0
  %1182 = vmatprep.mubr.bf16.mxu0 %v863
  %1183 = vmatmul.mubr.bf16.gmra.mrb[0].mxu0 %v862
  %v1184 = vpop.f32.mrb[0].mxu0
  %v1185 = vadd.f32 0.0, %v1184
  %v1186 = vpop.f32.mrb[0].mxu0
  %v1187 = vpop.f32.mrb[0].mxu0
  %v1188 = vadd.f32 0.0, %v1187
  %v1189 = vpop.f32.mrb[0].mxu0
  %1190 = vmatprep.mubr.bf16.mxu0 %v867
  %1191 = vmatmul.mubr.bf16.gmra.mrb[0].mxu0 %v866
  %v1192 = vpop.f32.mrb[0].mxu0
  %v1193 = vadd.f32 0.0, %v1192
  %v1194 = vpop.f32.mrb[0].mxu0
  %v1195 = vpop.f32.mrb[0].mxu0
  %v1196 = vadd.f32 0.0, %v1195
  %v1197 = vpop.f32.mrb[0].mxu0
  %1198 = vmatprep.mubr.bf16.mxu0 %v871
  %1199 = vmatmul.mubr.bf16.gmra.mrb[0].mxu0 %v870
  %v1200 = vpop.f32.mrb[0].mxu0
  %v1201 = vadd.f32 0.0, %v1200
  %v1202 = vpop.f32.mrb[0].mxu0
  %v1203 = vpop.f32.mrb[0].mxu0
  %v1204 = vadd.f32 0.0, %v1203
  %v1205 = vpop.f32.mrb[0].mxu0
  %1206 = vmatprep.mubr.bf16.mxu0 %v875
  %1207 = vmatmul.mubr.bf16.gmra.mrb[0].mxu0 %v874
  %v1208 = vpop.f32.mrb[0].mxu0
  %v1209 = vadd.f32 0.0, %v1208
  %v1210 = vpop.f32.mrb[0].mxu0
  %v1211 = vpop.f32.mrb[0].mxu0
  %v1212 = vadd.f32 0.0, %v1211
  %v1213 = vpop.f32.mrb[0].mxu0
  %1214 = vmatprep.mubr.bf16.mxu0 %v879
  %1215 = vmatmul.mubr.bf16.gmra.mrb[0].mxu0 %v878
  %v1216 = vpop.f32.mrb[0].mxu0
  %v1217 = vadd.f32 0.0, %v1216
  %v1218 = vpop.f32.mrb[0].mxu0
  %v1219 = vpop.f32.mrb[0].mxu0
  %v1220 = vadd.f32 0.0, %v1219
  %v1221 = vpop.f32.mrb[0].mxu0
  %1222 = vmatprep.mubr.bf16.mxu0 %v883
  %1223 = vmatmul.mubr.bf16.gmra.mrb[0].mxu0 %v882
  %v1224 = vpop.f32.mrb[0].mxu0
  %v1225 = vadd.f32 0.0, %v1224
  %v1226 = vpop.f32.mrb[0].mxu0
  %v1227 = vpop.f32.mrb[0].mxu0
  %v1228 = vpop.f32.mrb[0].mxu0
  %1229 = vdwg.mxu0
  %1230 = vmatprep.subr.bf16.mxu0 0
  %1231 = vmatpush1.bf16.msra.mxu0 %v1094
  %1232 = vmatprep.subr.bf16.mxu0 0
  %1233 = vmatpush1.bf16.msra.mxu0 %v1095
  %1234 = vmatprep.subr.bf16.mxu0 0
  %1235 = vmatpush1.bf16.msra.mxu0 %v1096
  %1236 = vmatprep.subr.bf16.mxu0 0
  %1237 = vmatpush1.bf16.msra.mxu0 %v1097
  %1238 = vmatprep.subr.bf16.mxu0 0
  %1239 = vmatpush1.bf16.msra.mxu0 %v1098
  %1240 = vmatprep.subr.bf16.mxu0 0
  %1241 = vmatpush1.bf16.msra.mxu0 %v1099
  %1242 = vmatprep.subr.bf16.mxu0 0
  %1243 = vmatpush1.bf16.msra.mxu0 %v1100
  %1244 = vmatprep.subr.bf16.mxu0 0
  %1245 = vmatpush1.bf16.msra.mxu0 %v1101
  %1246 = vmatprep.subr.bf16.mxu0 0
  %1247 = vmatpush1.bf16.msra.mxu0 %v1102
  %1248 = vmatprep.subr.bf16.mxu0 0
  %1249 = vmatpush1.bf16.msra.mxu0 %v1103
  %1250 = vmatprep.subr.bf16.mxu0 0
  %1251 = vmatpush1.bf16.msra.mxu0 %v1104
  %1252 = vmatprep.subr.bf16.mxu0 0
  %1253 = vmatpush1.bf16.msra.mxu0 %v1105
  %1254 = vmatprep.subr.bf16.mxu0 0
  %1255 = vmatpush1.bf16.msra.mxu0 %v1106
  %1256 = vmatprep.subr.bf16.mxu0 0
  %1257 = vmatpush1.bf16.msra.mxu0 %v1107
  %1258 = vmatprep.subr.bf16.mxu0 0
  %1259 = vmatpush1.bf16.msra.mxu0 %v1108
  %1260 = vmatprep.subr.bf16.mxu0 0
  %1261 = vmatpush1.bf16.msra.mxu0 %v1109
  %1262 = vmatprep.mubr.bf16.mxu0 %v861
  %1263 = vmatmul.mubr.bf16.gmra.mrb[0].mxu0 %v860
  %v1264 = vpop.f32.mrb[0].mxu0
  %v1265 = vadd.f32 %v1177, %v1264
  %v1266 = vpop.f32.mrb[0].mxu0
  %v1267 = vpop.f32.mrb[0].mxu0
  %v1268 = vadd.f32 %v1180, %v1267
  %v1269 = vpop.f32.mrb[0].mxu0
  %1270 = vmatprep.mubr.bf16.mxu0 %v865
  %1271 = vmatmul.mubr.bf16.gmra.mrb[0].mxu0 %v864
  %v1272 = vpop.f32.mrb[0].mxu0
  %v1273 = vadd.f32 %v1185, %v1272
  %v1274 = vpop.f32.mrb[0].mxu0
  %v1275 = vpop.f32.mrb[0].mxu0
  %v1276 = vadd.f32 %v1188, %v1275
  %v1277 = vpop.f32.mrb[0].mxu0
  %1278 = vmatprep.mubr.bf16.mxu0 %v869
  %1279 = vmatmul.mubr.bf16.gmra.mrb[0].mxu0 %v868
  %v1280 = vpop.f32.mrb[0].mxu0
  %v1281 = vadd.f32 %v1193, %v1280
  %v1282 = vpop.f32.mrb[0].mxu0
  %v1283 = vpop.f32.mrb[0].mxu0
  %v1284 = vadd.f32 %v1196, %v1283
  %v1285 = vpop.f32.mrb[0].mxu0
  %1286 = vmatprep.mubr.bf16.mxu0 %v873
  %1287 = vmatmul.mubr.bf16.gmra.mrb[0].mxu0 %v872
  %v1288 = vpop.f32.mrb[0].mxu0
  %v1289 = vadd.f32 %v1201, %v1288
  %v1290 = vpop.f32.mrb[0].mxu0
  %v1291 = vpop.f32.mrb[0].mxu0
  %v1292 = vadd.f32 %v1204, %v1291
  %v1293 = vpop.f32.mrb[0].mxu0
  %1294 = vmatprep.mubr.bf16.mxu0 %v877
  %1295 = vmatmul.mubr.bf16.gmra.mrb[0].mxu0 %v876
  %v1296 = vpop.f32.mrb[0].mxu0
  %v1297 = vadd.f32 %v1209, %v1296
  %v1298 = vpop.f32.mrb[0].mxu0
  %v1299 = vpop.f32.mrb[0].mxu0
  %v1300 = vadd.f32 %v1212, %v1299
  %v1301 = vpop.f32.mrb[0].mxu0
  %1302 = vmatprep.mubr.bf16.mxu0 %v881
  %1303 = vmatmul.mubr.bf16.gmra.mrb[0].mxu0 %v880
  %v1304 = vpop.f32.mrb[0].mxu0
  %v1305 = vadd.f32 %v1217, %v1304
  %v1306 = vpop.f32.mrb[0].mxu0
  %v1307 = vpop.f32.mrb[0].mxu0
  %v1308 = vadd.f32 %v1220, %v1307
  %v1309 = vpop.f32.mrb[0].mxu0
  %1310 = vmatprep.mubr.bf16.mxu0 %v885
  %1311 = vmatmul.mubr.bf16.gmra.mrb[0].mxu0 %v884
  %v1312 = vpop.f32.mrb[0].mxu0
  %v1313 = vadd.f32 %v1225, %v1312
  %v1314 = vpop.f32.mrb[0].mxu0
  %v1315 = vpop.f32.mrb[0].mxu0
  %v1316 = vpop.f32.mrb[0].mxu0
  %1317 = vdwg.mxu0
  %vm1318 = vcmask 523264
  %v1319 = vsel %vm1318, %v1265, 0.0
  %v1320 = vsel %vm1318, %v1268, 0.0
  %v1321 = vadd.f32 %v1319, %v1320
  %v1322 = vsel %vm1318, %v1273, 0.0
  %v1323 = vadd.f32 %v1321, %v1322
  %v1324 = vsel %vm1318, %v1276, 0.0
  %v1325 = vadd.f32 %v1323, %v1324
  %v1326 = vsel %vm1318, %v1281, 0.0
  %v1327 = vadd.f32 %v1325, %v1326
  %v1328 = vsel %vm1318, %v1284, 0.0
  %v1329 = vadd.f32 %v1327, %v1328
  %v1330 = vsel %vm1318, %v1289, 0.0
  %v1331 = vadd.f32 %v1329, %v1330
  %v1332 = vsel %vm1318, %v1292, 0.0
  %v1333 = vadd.f32 %v1331, %v1332
  %v1334 = vsel %vm1318, %v1297, 0.0
  %v1335 = vadd.f32 %v1333, %v1334
  %v1336 = vsel %vm1318, %v1300, 0.0
  %v1337 = vadd.f32 %v1335, %v1336
  %v1338 = vsel %vm1318, %v1305, 0.0
  %v1339 = vadd.f32 %v1337, %v1338
  %v1340 = vsel %vm1318, %v1308, 0.0
  %v1341 = vadd.f32 %v1339, %v1340
  %vm1342 = vcmask 517120
  %v1343 = vsel %vm1342, %v1313, 0.0
  %v1344 = vadd.f32 %v1341, %v1343
  %v1345 = vrot.slane %v1344, 4
  %v1346 = vadd.f32 %v1344, %v1345
  %v1347 = vrot.slane %v1346, 2
  %v1348 = vadd.f32 %v1346, %v1347
  %v1349 = vrot.slane %v1348, 1
  %v1350 = vadd.f32 %v1348, %v1349
  %v1351 = vrcp.pop 98.0
  %v1352 = vmul.f32 %v1350, %v1351
  %v1353 = vsub.f32 %v1265, %v1352
  %v1354 = vsub.f32 %v1268, %v1352
  %v1355 = vsub.f32 %v1273, %v1352
  %v1356 = vsub.f32 %v1276, %v1352
  %v1357 = vsub.f32 %v1281, %v1352
  %v1358 = vsub.f32 %v1284, %v1352
  %v1359 = vsub.f32 %v1289, %v1352
  %v1360 = vsub.f32 %v1292, %v1352
  %v1361 = vsub.f32 %v1297, %v1352
  %v1362 = vsub.f32 %v1300, %v1352
  %v1363 = vsub.f32 %v1305, %v1352
  %v1364 = vsub.f32 %v1308, %v1352
  %v1365 = vsub.f32 %v1313, %v1352
  %v1366 = vmul.f32 %v1353, %v1353
  %v1367 = vmul.f32 %v1354, %v1354
  %v1368 = vmul.f32 %v1355, %v1355
  %v1369 = vmul.f32 %v1356, %v1356
  %v1370 = vmul.f32 %v1357, %v1357
  %v1371 = vmul.f32 %v1358, %v1358
  %v1372 = vmul.f32 %v1359, %v1359
  %v1373 = vmul.f32 %v1360, %v1360
  %v1374 = vmul.f32 %v1361, %v1361
  %v1375 = vmul.f32 %v1362, %v1362
  %v1376 = vmul.f32 %v1363, %v1363
  %v1377 = vmul.f32 %v1364, %v1364
  %v1378 = vmul.f32 %v1365, %v1365
  %v1379 = vsel %vm1318, %v1366, 0.0
  %v1380 = vsel %vm1318, %v1367, 0.0
  %v1381 = vadd.f32 %v1379, %v1380
  %v1382 = vsel %vm1318, %v1368, 0.0
  %v1383 = vadd.f32 %v1381, %v1382
  %v1384 = vsel %vm1318, %v1369, 0.0
  %v1385 = vadd.f32 %v1383, %v1384
  %v1386 = vsel %vm1318, %v1370, 0.0
  %v1387 = vadd.f32 %v1385, %v1386
  %v1388 = vsel %vm1318, %v1371, 0.0
  %v1389 = vadd.f32 %v1387, %v1388
  %v1390 = vsel %vm1318, %v1372, 0.0
  %v1391 = vadd.f32 %v1389, %v1390
  %v1392 = vsel %vm1318, %v1373, 0.0
  %v1393 = vadd.f32 %v1391, %v1392
  %v1394 = vsel %vm1318, %v1374, 0.0
  %v1395 = vadd.f32 %v1393, %v1394
  %v1396 = vsel %vm1318, %v1375, 0.0
  %v1397 = vadd.f32 %v1395, %v1396
  %v1398 = vsel %vm1318, %v1376, 0.0
  %v1399 = vadd.f32 %v1397, %v1398
  %v1400 = vsel %vm1318, %v1377, 0.0
  %v1401 = vadd.f32 %v1399, %v1400
  %v1402 = vsel %vm1342, %v1378, 0.0
  %v1403 = vadd.f32 %v1401, %v1402
  %v1404 = vrot.slane %v1403, 4
  %v1405 = vadd.f32 %v1403, %v1404
  %v1406 = vrot.slane %v1405, 2
  %v1407 = vadd.f32 %v1405, %v1406
  %v1408 = vrot.slane %v1407, 1
  %v1409 = vadd.f32 %v1407, %v1408
  %v1410 = vmul.f32 %v1409, %v1351
  %v1411 = vadd.f32 %v1410, 1e-05
  %v1412 = vrsqrt.pop %v1411
  %v1413 = vmul.f32 %v1353, %v1412
  %v1414 = vmul.f32 %v1354, %v1412
  %v1415 = vmul.f32 %v1355, %v1412
  %v1416 = vmul.f32 %v1356, %v1412
  %v1417 = vmul.f32 %v1357, %v1412
  %v1418 = vmul.f32 %v1358, %v1412
  %v1419 = vmul.f32 %v1359, %v1412
  %v1420 = vmul.f32 %v1360, %v1412
  %v1421 = vmul.f32 %v1361, %v1412
  %v1422 = vmul.f32 %v1362, %v1412
  %v1423 = vmul.f32 %v1363, %v1412
  %v1424 = vmul.f32 %v1364, %v1412
  %v1425 = vmul.f32 %v1365, %v1412
  %v1426 = vld [vmem:[%s3] sm:$0x1]
  %v1428 = vlaneseq
  %v1429 = vshrl.u32 %v1428, 7
  %v1430 = vsub.s32 0, %v1429
  %v1431 = vrot.slane %v1426, %v1430
  %v1433 = vmul.f32 %v1413, %v1431
  %v1434 = vmul.f32 %v1414, %v1431
  %v1435 = vmul.f32 %v1415, %v1431
  %v1436 = vmul.f32 %v1416, %v1431
  %v1437 = vmul.f32 %v1417, %v1431
  %v1438 = vmul.f32 %v1418, %v1431
  %v1439 = vmul.f32 %v1419, %v1431
  %v1440 = vmul.f32 %v1420, %v1431
  %v1441 = vmul.f32 %v1421, %v1431
  %v1442 = vmul.f32 %v1422, %v1431
  %v1443 = vmul.f32 %v1423, %v1431
  %v1444 = vmul.f32 %v1424, %v1431
  %v1445 = vmul.f32 %v1425, %v1431
  %v1446 = vld [vmem:[%s4] sm:$0x1]
  %v1448 = vlaneseq
  %v1449 = vshrl.u32 %v1448, 7
  %v1450 = vsub.s32 0, %v1449
  %v1451 = vrot.slane %v1446, %v1450
  %v1453 = vadd.f32 %v1433, %v1451
  %v1454 = vadd.f32 %v1434, %v1451
  %v1455 = vadd.f32 %v1435, %v1451
  %v1456 = vadd.f32 %v1436, %v1451
  %v1457 = vadd.f32 %v1437, %v1451
  %v1458 = vadd.f32 %v1438, %v1451
  %v1459 = vadd.f32 %v1439, %v1451
  %v1460 = vadd.f32 %v1440, %v1451
  %v1461 = vadd.f32 %v1441, %v1451
  %v1462 = vadd.f32 %v1442, %v1451
  %v1463 = vadd.f32 %v1443, %v1451
  %v1464 = vadd.f32 %v1444, %v1451
  %v1465 = vadd.f32 %v1445, %v1451
  %vm1466 = vcmp.ge.f32.partialorder %v1453, 0.0
  %vm1467 = vcmp.ge.f32.partialorder %v1454, 0.0
  %vm1468 = vcmp.ge.f32.partialorder %v1455, 0.0
  %vm1469 = vcmp.ge.f32.partialorder %v1456, 0.0
  %vm1470 = vcmp.ge.f32.partialorder %v1457, 0.0
  %vm1471 = vcmp.ge.f32.partialorder %v1458, 0.0
  %vm1472 = vcmp.ge.f32.partialorder %v1459, 0.0
  %vm1473 = vcmp.ge.f32.partialorder %v1460, 0.0
  %vm1474 = vcmp.ge.f32.partialorder %v1461, 0.0
  %vm1475 = vcmp.ge.f32.partialorder %v1462, 0.0
  %vm1476 = vcmp.ge.f32.partialorder %v1463, 0.0
  %vm1477 = vcmp.ge.f32.partialorder %v1464, 0.0
  %vm1478 = vcmp.ge.f32.partialorder %v1465, 0.0
  %v1479 = vmul.f32 %v1453, 0.2
  %v1480 = vmul.f32 %v1454, 0.2
  %v1481 = vmul.f32 %v1455, 0.2
  %v1482 = vmul.f32 %v1456, 0.2
  %v1483 = vmul.f32 %v1457, 0.2
  %v1484 = vmul.f32 %v1458, 0.2
  %v1485 = vmul.f32 %v1459, 0.2
  %v1486 = vmul.f32 %v1460, 0.2
  %v1487 = vmul.f32 %v1461, 0.2
  %v1488 = vmul.f32 %v1462, 0.2
  %v1489 = vmul.f32 %v1463, 0.2
  %v1490 = vmul.f32 %v1464, 0.2
  %v1491 = vmul.f32 %v1465, 0.2
  %v1492 = vsel %vm1466, %v1453, %v1479
  %v1493 = vsel %vm1467, %v1454, %v1480
  %v1494 = vsel %vm1468, %v1455, %v1481
  %v1495 = vsel %vm1469, %v1456, %v1482
  %v1496 = vsel %vm1470, %v1457, %v1483
  %v1497 = vsel %vm1471, %v1458, %v1484
  %v1498 = vsel %vm1472, %v1459, %v1485
  %v1499 = vsel %vm1473, %v1460, %v1486
  %v1500 = vsel %vm1474, %v1461, %v1487
  %v1501 = vsel %vm1475, %v1462, %v1488
  %v1502 = vsel %vm1476, %v1463, %v1489
  %v1503 = vsel %vm1477, %v1464, %v1490
  %v1504 = vsel %vm1478, %v1465, %v1491
  %v1505 = vld [vmem:[%s5] sm:$0xf]
  %v1506 = vld [vmem:[%s5 + $0x4] sm:$0xf]
  %v1507 = vld [vmem:[%s5 + $0x8] sm:$0xf]
  %v1508 = vld [vmem:[%s5 + $0xc] sm:$0xf]
  %v1509 = vld [vmem:[%s5 + $0x10] sm:$0xf]
  %v1510 = vld [vmem:[%s5 + $0x14] sm:$0xf]
  %v1511 = vld [vmem:[%s5 + $0x18] sm:$0xf]
  %v1512 = vld [vmem:[%s5 + $0x1c] sm:$0xf]
  %v1513 = vld [vmem:[%s5 + $0x20] sm:$0xf]
  %v1514 = vld [vmem:[%s5 + $0x24] sm:$0xf]
  %v1515 = vld [vmem:[%s5 + $0x28] sm:$0xf]
  %v1516 = vld [vmem:[%s5 + $0x2c] sm:$0xf]
  %v1517 = vld [vmem:[%s5 + $0x30] sm:$0xf]
  %v1518 = vld [vmem:[%s5 + $0x34] sm:$0xf]
  %v1519 = vld [vmem:[%s5 + $0x38] sm:$0xf]
  %v1520 = vld [vmem:[%s5 + $0x3c] sm:$0xf]
  %v1521 = vld [vmem:[%s5 + $0x40] sm:$0xf]
  %v1522 = vld [vmem:[%s5 + $0x44] sm:$0xf]
  %v1523 = vld [vmem:[%s5 + $0x48] sm:$0xf]
  %v1524 = vld [vmem:[%s5 + $0x4c] sm:$0xf]
  %v1525 = vld [vmem:[%s5 + $0x50] sm:$0xf]
  %v1526 = vld [vmem:[%s5 + $0x54] sm:$0xf]
  %v1527 = vld [vmem:[%s5 + $0x58] sm:$0xf]
  %v1528 = vld [vmem:[%s5 + $0x5c] sm:$0xf]
  %v1529 = vld [vmem:[%s5 + $0x60] sm:$0xf]
  %v1530 = vld [vmem:[%s5 + $0x64] sm:$0xf]
  %v1531 = vld [vmem:[%s5 + $0x68] sm:$0xf]
  %v1532 = vld [vmem:[%s5 + $0x6c] sm:$0xf]
  %v1533 = vld [vmem:[%s5 + $0x70] sm:$0xf]
  %v1534 = vld [vmem:[%s5 + $0x74] sm:$0xf]
  %v1535 = vld [vmem:[%s5 + $0x78] sm:$0xf]
  %v1536 = vld [vmem:[%s5 + $0x7c] sm:$0xf]
  %v1537 = vld [vmem:[%s5 + $0x80] sm:$0xf]
  %v1538 = vld [vmem:[%s5 + $0x84] sm:$0xf]
  %v1539 = vld [vmem:[%s5 + $0x88] sm:$0xf]
  %v1540 = vld [vmem:[%s5 + $0x8c] sm:$0xf]
  %v1541 = vpack.c.bf16 %v1493, %v1492
  %v1542 = vpack.c.bf16 %v1495, %v1494
  %v1543 = vpack.c.bf16 %v1497, %v1496
  %v1544 = vpack.c.bf16 %v1499, %v1498
  %v1545 = vpack.c.bf16 %v1501, %v1500
  %v1546 = vpack.c.bf16 %v1503, %v1502
  %v1547 = vpack.c.bf16 %v1504, %v1504
  %v1584 = vunpack.c.l.b16 %v1505
  %v1585 = vunpack.c.l.b16 %v1506
  %v1586 = vunpack.c.l.b16 %v1507
  %v1587 = vunpack.c.l.b16 %v1508
  %v1588 = vunpack.c.l.b16 %v1509
  %v1589 = vunpack.c.l.b16 %v1510
  %v1590 = vunpack.c.l.b16 %v1511
  %v1591 = vunpack.c.l.b16 %v1512
  %v1592 = vunpack.c.l.b16 %v1513
  %v1593 = vunpack.c.l.b16 %v1514
  %v1594 = vunpack.c.l.b16 %v1515
  %v1595 = vunpack.c.l.b16 %v1516
  %v1596 = vunpack.c.l.b16 %v1517
  %v1597 = vunpack.c.l.b16 %v1518
  %v1598 = vunpack.c.l.b16 %v1519
  %v1599 = vunpack.c.l.b16 %v1520
  %v1600 = vunpack.c.l.b16 %v1521
  %v1601 = vunpack.c.l.b16 %v1522
  %v1602 = vunpack.c.l.b16 %v1523
  %v1603 = vunpack.c.l.b16 %v1524
  %v1604 = vunpack.c.l.b16 %v1525
  %v1605 = vunpack.c.l.b16 %v1526
  %v1606 = vunpack.c.l.b16 %v1527
  %v1607 = vunpack.c.l.b16 %v1528
  %v1608 = vunpack.c.l.b16 %v1529
  %v1609 = vunpack.c.l.b16 %v1530
  %v1610 = vunpack.c.l.b16 %v1531
  %v1611 = vunpack.c.l.b16 %v1532
  %v1612 = vunpack.c.l.b16 %v1533
  %v1613 = vunpack.c.l.b16 %v1534
  %v1614 = vunpack.c.l.b16 %v1535
  %v1615 = vunpack.c.l.b16 %v1536
  %v1616 = vunpack.c.l.b16 %v1537
  %v1617 = vunpack.c.l.b16 %v1538
  %v1618 = vunpack.c.l.b16 %v1539
  %v1619 = vunpack.c.l.b16 %v1540
  %v1620 = vpack.c.b16 %v1585, %v1584
  %v1621 = vpack.c.b16 %v1587, %v1586
  %v1622 = vpack.c.b16 %v1589, %v1588
  %v1623 = vpack.c.b16 %v1591, %v1590
  %v1624 = vpack.c.b16 %v1593, %v1592
  %v1625 = vpack.c.b16 %v1595, %v1594
  %v1626 = vpack.c.b16 %v1597, %v1596
  %v1627 = vpack.c.b16 %v1599, %v1598
  %v1628 = vpack.c.b16 %v1601, %v1600
  %v1629 = vpack.c.b16 %v1603, %v1602
  %v1630 = vpack.c.b16 %v1605, %v1604
  %v1631 = vpack.c.b16 %v1607, %v1606
  %v1632 = vpack.c.b16 %v1609, %v1608
  %v1633 = vpack.c.b16 %v1611, %v1610
  %v1634 = vpack.c.b16 %v1613, %v1612
  %v1635 = vpack.c.b16 %v1615, %v1614
  %v1636 = vpack.c.b16 %v1617, %v1616
  %v1637 = vpack.c.b16 %v1619, %v1618
  %vm1638 = vcmask 801792
  %v1640 = vsel %vm1638, %v1620, 0
  %v1643 = vsel %vm1638, %v1621, 0
  %v1646 = vsel %vm1638, %v1622, 0
  %v1649 = vsel %vm1638, %v1623, 0
  %v1652 = vsel %vm1638, %v1624, 0
  %v1655 = vsel %vm1638, %v1625, 0
  %v1658 = vsel %vm1638, %v1626, 0
  %v1661 = vsel %vm1638, %v1627, 0
  %v1664 = vsel %vm1638, %v1628, 0
  %v1667 = vsel %vm1638, %v1629, 0
  %v1670 = vsel %vm1638, %v1630, 0
  %v1673 = vsel %vm1638, %v1631, 0
  %v1676 = vsel %vm1638, %v1632, 0
  %v1679 = vsel %vm1638, %v1633, 0
  %v1682 = vsel %vm1638, %v1634, 0
  %v1685 = vsel %vm1638, %v1635, 0
  %v1688 = vsel %vm1638, %v1636, 0
  %v1691 = vsel %vm1638, %v1637, 0
  %vm1693 = vcmask 1040384
  %v1695 = vsel %vm1693, %v1547, 0
  %1697 = vmatprep.subr.bf16.mxu0 0
  %1698 = vmatpush1.bf16.msra.mxu0 %v1541
  %1699 = vmatprep.subr.bf16.mxu0 0
  %1700 = vmatpush1.bf16.msra.mxu0 %v1542
  %1701 = vmatprep.subr.bf16.mxu0 0
  %1702 = vmatpush1.bf16.msra.mxu0 %v1543
  %1703 = vmatprep.subr.bf16.mxu0 0
  %1704 = vmatpush1.bf16.msra.mxu0 %v1544
  %1705 = vmatprep.subr.bf16.mxu0 0
  %1706 = vmatpush1.bf16.msra.mxu0 %v1545
  %1707 = vmatprep.subr.bf16.mxu0 0
  %1708 = vmatpush1.bf16.msra.mxu0 %v1546
  %1709 = vmatprep.subr.bf16.mxu0 0
  %1710 = vmatpush1.bf16.msra.mxu0 %v1695
  %1711 = vmatprep.subr.bf16.mxu0 0
  %1712 = vmatpush1.bf16.msra.mxu0 0
  %1713 = vmatprep.subr.bf16.mxu0 0
  %1714 = vmatpush1.bf16.msra.mxu0 0
  %1715 = vmatprep.subr.bf16.mxu0 0
  %1716 = vmatpush1.bf16.msra.mxu0 0
  %1717 = vmatprep.subr.bf16.mxu0 0
  %1718 = vmatpush1.bf16.msra.mxu0 0
  %1719 = vmatprep.subr.bf16.mxu0 0
  %1720 = vmatpush1.bf16.msra.mxu0 0
  %1721 = vmatprep.subr.bf16.mxu0 0
  %1722 = vmatpush1.bf16.msra.mxu0 0
  %1723 = vmatprep.subr.bf16.mxu0 0
  %1724 = vmatpush1.bf16.msra.mxu0 0
  %1725 = vmatprep.subr.bf16.mxu0 0
  %1726 = vmatpush1.bf16.msra.mxu0 0
  %1727 = vmatprep.subr.bf16.mxu0 0
  %1728 = vmatpush1.bf16.msra.mxu0 0
  %1729 = vmatprep.mubr.bf16.mxu0 0
  %1730 = vmatmul.mubr.bf16.gmra.mrb[0].mxu0 %v1640
  %v1731 = vpop.f32.mrb[0].mxu0
  %v1732 = vadd.f32 0.0, %v1731
  %v1733 = vpop.f32.mrb[0].mxu0
  %v1734 = vpop.f32.mrb[0].mxu0
  %v1735 = vadd.f32 0.0, %v1734
  %v1736 = vpop.f32.mrb[0].mxu0
  %1737 = vmatprep.mubr.bf16.mxu0 0
  %1738 = vmatmul.mubr.bf16.gmra.mrb[0].mxu0 %v1643
  %v1739 = vpop.f32.mrb[0].mxu0
  %v1740 = vadd.f32 0.0, %v1739
  %v1741 = vpop.f32.mrb[0].mxu0
  %v1742 = vpop.f32.mrb[0].mxu0
  %v1743 = vadd.f32 0.0, %v1742
  %v1744 = vpop.f32.mrb[0].mxu0
  %1745 = vmatprep.mubr.bf16.mxu0 0
  %1746 = vmatmul.mubr.bf16.gmra.mrb[0].mxu0 %v1646
  %v1747 = vpop.f32.mrb[0].mxu0
  %v1748 = vadd.f32 0.0, %v1747
  %v1749 = vpop.f32.mrb[0].mxu0
  %v1750 = vpop.f32.mrb[0].mxu0
  %v1751 = vadd.f32 0.0, %v1750
  %v1752 = vpop.f32.mrb[0].mxu0
  %1753 = vmatprep.mubr.bf16.mxu0 0
  %1754 = vmatmul.mubr.bf16.gmra.mrb[0].mxu0 %v1649
  %v1755 = vpop.f32.mrb[0].mxu0
  %v1756 = vadd.f32 0.0, %v1755
  %v1757 = vpop.f32.mrb[0].mxu0
  %v1758 = vpop.f32.mrb[0].mxu0
  %v1759 = vadd.f32 0.0, %v1758
  %v1760 = vpop.f32.mrb[0].mxu0
  %1761 = vmatprep.mubr.bf16.mxu0 0
  %1762 = vmatmul.mubr.bf16.gmra.mrb[0].mxu0 %v1652
  %v1763 = vpop.f32.mrb[0].mxu0
  %v1764 = vadd.f32 0.0, %v1763
  %v1765 = vpop.f32.mrb[0].mxu0
  %v1766 = vpop.f32.mrb[0].mxu0
  %v1767 = vadd.f32 0.0, %v1766
  %v1768 = vpop.f32.mrb[0].mxu0
  %1769 = vmatprep.mubr.bf16.mxu0 0
  %1770 = vmatmul.mubr.bf16.gmra.mrb[0].mxu0 %v1655
  %v1771 = vpop.f32.mrb[0].mxu0
  %v1772 = vadd.f32 0.0, %v1771
  %v1773 = vpop.f32.mrb[0].mxu0
  %v1774 = vpop.f32.mrb[0].mxu0
  %v1775 = vadd.f32 0.0, %v1774
  %v1776 = vpop.f32.mrb[0].mxu0
  %1777 = vmatprep.mubr.bf16.mxu0 0
  %1778 = vmatmul.mubr.bf16.gmra.mrb[0].mxu0 %v1658
  %v1779 = vpop.f32.mrb[0].mxu0
  %v1780 = vadd.f32 0.0, %v1779
  %v1781 = vpop.f32.mrb[0].mxu0
  %v1782 = vpop.f32.mrb[0].mxu0
  %v1783 = vadd.f32 0.0, %v1782
  %v1784 = vpop.f32.mrb[0].mxu0
  %1785 = vmatprep.mubr.bf16.mxu0 0
  %1786 = vmatmul.mubr.bf16.gmra.mrb[0].mxu0 %v1661
  %v1787 = vpop.f32.mrb[0].mxu0
  %v1788 = vadd.f32 0.0, %v1787
  %v1789 = vpop.f32.mrb[0].mxu0
  %v1790 = vpop.f32.mrb[0].mxu0
  %v1791 = vadd.f32 0.0, %v1790
  %v1792 = vpop.f32.mrb[0].mxu0
  %1793 = vmatprep.mubr.bf16.mxu0 0
  %1794 = vmatmul.mubr.bf16.gmra.mrb[0].mxu0 %v1664
  %v1795 = vpop.f32.mrb[0].mxu0
  %v1796 = vadd.f32 0.0, %v1795
  %v1797 = vpop.f32.mrb[0].mxu0
  %v1798 = vpop.f32.mrb[0].mxu0
  %v1799 = vadd.f32 0.0, %v1798
  %v1800 = vpop.f32.mrb[0].mxu0
  %1801 = vmatprep.mubr.bf16.mxu0 0
  %1802 = vmatmul.mubr.bf16.gmra.mrb[0].mxu0 %v1667
  %v1803 = vpop.f32.mrb[0].mxu0
  %v1804 = vadd.f32 0.0, %v1803
  %v1805 = vpop.f32.mrb[0].mxu0
  %v1806 = vpop.f32.mrb[0].mxu0
  %v1807 = vadd.f32 0.0, %v1806
  %v1808 = vpop.f32.mrb[0].mxu0
  %1809 = vmatprep.mubr.bf16.mxu0 0
  %1810 = vmatmul.mubr.bf16.gmra.mrb[0].mxu0 %v1670
  %v1811 = vpop.f32.mrb[0].mxu0
  %v1812 = vadd.f32 0.0, %v1811
  %v1813 = vpop.f32.mrb[0].mxu0
  %v1814 = vpop.f32.mrb[0].mxu0
  %v1815 = vadd.f32 0.0, %v1814
  %v1816 = vpop.f32.mrb[0].mxu0
  %1817 = vmatprep.mubr.bf16.mxu0 0
  %1818 = vmatmul.mubr.bf16.gmra.mrb[0].mxu0 %v1673
  %v1819 = vpop.f32.mrb[0].mxu0
  %v1820 = vadd.f32 0.0, %v1819
  %v1821 = vpop.f32.mrb[0].mxu0
  %v1822 = vpop.f32.mrb[0].mxu0
  %v1823 = vadd.f32 0.0, %v1822
  %v1824 = vpop.f32.mrb[0].mxu0
  %1825 = vmatprep.mubr.bf16.mxu0 0
  %1826 = vmatmul.mubr.bf16.gmra.mrb[0].mxu0 %v1676
  %v1827 = vpop.f32.mrb[0].mxu0
  %v1828 = vadd.f32 0.0, %v1827
  %v1829 = vpop.f32.mrb[0].mxu0
  %v1830 = vpop.f32.mrb[0].mxu0
  %v1831 = vadd.f32 0.0, %v1830
  %v1832 = vpop.f32.mrb[0].mxu0
  %1833 = vmatprep.mubr.bf16.mxu0 0
  %1834 = vmatmul.mubr.bf16.gmra.mrb[0].mxu0 %v1679
  %v1835 = vpop.f32.mrb[0].mxu0
  %v1836 = vadd.f32 0.0, %v1835
  %v1837 = vpop.f32.mrb[0].mxu0
  %v1838 = vpop.f32.mrb[0].mxu0
  %v1839 = vadd.f32 0.0, %v1838
  %v1840 = vpop.f32.mrb[0].mxu0
  %1841 = vmatprep.mubr.bf16.mxu0 0
  %1842 = vmatmul.mubr.bf16.gmra.mrb[0].mxu0 %v1682
  %v1843 = vpop.f32.mrb[0].mxu0
  %v1844 = vadd.f32 0.0, %v1843
  %v1845 = vpop.f32.mrb[0].mxu0
  %v1846 = vpop.f32.mrb[0].mxu0
  %v1847 = vadd.f32 0.0, %v1846
  %v1848 = vpop.f32.mrb[0].mxu0
  %1849 = vmatprep.mubr.bf16.mxu0 0
  %1850 = vmatmul.mubr.bf16.gmra.mrb[0].mxu0 %v1685
  %v1851 = vpop.f32.mrb[0].mxu0
  %v1852 = vadd.f32 0.0, %v1851
  %v1853 = vpop.f32.mrb[0].mxu0
  %v1854 = vpop.f32.mrb[0].mxu0
  %v1855 = vadd.f32 0.0, %v1854
  %v1856 = vpop.f32.mrb[0].mxu0
  %1857 = vmatprep.mubr.bf16.mxu0 0
  %1858 = vmatmul.mubr.bf16.gmra.mrb[0].mxu0 %v1688
  %v1859 = vpop.f32.mrb[0].mxu0
  %v1860 = vadd.f32 0.0, %v1859
  %v1861 = vpop.f32.mrb[0].mxu0
  %v1862 = vpop.f32.mrb[0].mxu0
  %v1863 = vadd.f32 0.0, %v1862
  %v1864 = vpop.f32.mrb[0].mxu0
  %1865 = vmatprep.mubr.bf16.mxu0 0
  %1866 = vmatmul.mubr.bf16.gmra.mrb[0].mxu0 %v1691
  %v1867 = vpop.f32.mrb[0].mxu0
  %v1868 = vadd.f32 0.0, %v1867
  %v1869 = vpop.f32.mrb[0].mxu0
  %v1870 = vpop.f32.mrb[0].mxu0
  %v1871 = vadd.f32 0.0, %v1870
  %v1872 = vpop.f32.mrb[0].mxu0
  %1873 = vdwg.mxu0
  %v1874 = vpack.c.bf16 %v1735, %v1732
  %v1875 = vpack.c.bf16 %v1743, %v1740
  %v1876 = vld [vmem:[%s6] sm:$0xf]
  %v1877 = vld [vmem:[%s6 + $0x4] sm:$0xf]
  %v1878 = vld [vmem:[%s6 + $0x8] sm:$0xf]
  %v1879 = vld [vmem:[%s6 + $0xc] sm:$0xf]
  %v1880 = vld [vmem:[%s6 + $0x10] sm:$0xf]
  %v1881 = vld [vmem:[%s6 + $0x14] sm:$0xf]
  %v1882 = vld [vmem:[%s6 + $0x18] sm:$0xf]
  %v1883 = vld [vmem:[%s6 + $0x1c] sm:$0xf]
  %v1884 = vpack.c.bf16 %v1751, %v1748
  %v1885 = vpack.c.bf16 %v1759, %v1756
  %s1886 = scalar_lea.vmem %s6, 32
  %v1887 = vld [vmem:[%s1886] sm:$0xf]
  %v1888 = vld [vmem:[%s1886 + $0x4] sm:$0xf]
  %v1889 = vld [vmem:[%s1886 + $0x8] sm:$0xf]
  %v1890 = vld [vmem:[%s1886 + $0xc] sm:$0xf]
  %v1891 = vld [vmem:[%s1886 + $0x10] sm:$0xf]
  %v1892 = vld [vmem:[%s1886 + $0x14] sm:$0xf]
  %v1893 = vld [vmem:[%s1886 + $0x18] sm:$0xf]
  %v1894 = vld [vmem:[%s1886 + $0x1c] sm:$0xf]
  %v1903 = vunpack.c.l.b16 %v1887
  %v1904 = vunpack.c.l.b16 %v1888
  %v1905 = vunpack.c.l.b16 %v1889
  %v1906 = vunpack.c.l.b16 %v1890
  %v1907 = vunpack.c.l.b16 %v1891
  %v1908 = vunpack.c.l.b16 %v1892
  %v1909 = vunpack.c.l.b16 %v1893
  %v1910 = vunpack.c.l.b16 %v1894
  %v1911 = vpack.c.b16 %v1904, %v1903
  %v1912 = vpack.c.b16 %v1906, %v1905
  %v1913 = vpack.c.b16 %v1908, %v1907
  %v1914 = vpack.c.b16 %v1910, %v1909
  %v1920 = vsel %vm1318, %v1884, 0
  %v1923 = vsel %vm1318, %v1885, 0
  %1925 = vmatprep.subr.bf16.mxu0 0
  %1926 = vmatpush1.bf16.msra.mxu0 %v1911
  %1927 = vmatprep.subr.bf16.mxu0 0
  %1928 = vmatpush1.bf16.msra.mxu0 %v1912
  %1929 = vmatprep.subr.bf16.mxu0 0
  %1930 = vmatpush1.bf16.msra.mxu0 %v1913
  %1931 = vmatprep.subr.bf16.mxu0 0
  %1932 = vmatpush1.bf16.msra.mxu0 %v1914
  %1933 = vmatprep.subr.bf16.mxu0 0
  %1934 = vmatpush1.bf16.msra.mxu0 0
  %1935 = vmatprep.subr.bf16.mxu0 0
  %1936 = vmatpush1.bf16.msra.mxu0 0
  %1937 = vmatprep.subr.bf16.mxu0 0
  %1938 = vmatpush1.bf16.msra.mxu0 0
  %1939 = vmatprep.subr.bf16.mxu0 0
  %1940 = vmatpush1.bf16.msra.mxu0 0
  %1941 = vmatprep.subr.bf16.mxu0 0
  %1942 = vmatpush1.bf16.msra.mxu0 0
  %1943 = vmatprep.subr.bf16.mxu0 0
  %1944 = vmatpush1.bf16.msra.mxu0 0
  %1945 = vmatprep.subr.bf16.mxu0 0
  %1946 = vmatpush1.bf16.msra.mxu0 0
  %1947 = vmatprep.subr.bf16.mxu0 0
  %1948 = vmatpush1.bf16.msra.mxu0 0
  %1949 = vmatprep.subr.bf16.mxu0 0
  %1950 = vmatpush1.bf16.msra.mxu0 0
  %1951 = vmatprep.subr.bf16.mxu0 0
  %1952 = vmatpush1.bf16.msra.mxu0 0
  %1953 = vmatprep.subr.bf16.mxu0 0
  %1954 = vmatpush1.bf16.msra.mxu0 0
  %1955 = vmatprep.subr.bf16.mxu0 0
  %1956 = vmatpush1.bf16.msra.mxu0 0
  %1957 = vmatprep.mubr.bf16.mxu0 0
  %1958 = vmatmul.mubr.bf16.gmra.mrb[0].mxu0 %v1920
  %v1959 = vpop.f32.mrb[0].mxu0
  %v1960 = vadd.f32 0.0, %v1959
  %v1961 = vpop.f32.mrb[0].mxu0
  %v1962 = vpop.f32.mrb[0].mxu0
  %v1963 = vadd.f32 0.0, %v1962
  %v1964 = vpop.f32.mrb[0].mxu0
  %1965 = vmatprep.mubr.bf16.mxu0 0
  %1966 = vmatmul.mubr.bf16.gmra.mrb[0].mxu0 %v1923
  %v1967 = vpop.f32.mrb[0].mxu0
  %v1968 = vadd.f32 0.0, %v1967
  %v1969 = vpop.f32.mrb[0].mxu0
  %v1970 = vpop.f32.mrb[0].mxu0
  %v1971 = vadd.f32 0.0, %v1970
  %v1972 = vpop.f32.mrb[0].mxu0
  %1973 = vdwg.mxu0
  %v1982 = vunpack.c.l.b16 %v1876
  %v1983 = vunpack.c.l.b16 %v1877
  %v1984 = vunpack.c.l.b16 %v1878
  %v1985 = vunpack.c.l.b16 %v1879
  %v1986 = vunpack.c.l.b16 %v1880
  %v1987 = vunpack.c.l.b16 %v1881
  %v1988 = vunpack.c.l.b16 %v1882
  %v1989 = vunpack.c.l.b16 %v1883
  %v1990 = vpack.c.b16 %v1983, %v1982
  %v1991 = vpack.c.b16 %v1985, %v1984
  %v1992 = vpack.c.b16 %v1987, %v1986
  %v1993 = vpack.c.b16 %v1989, %v1988
  %v1999 = vsel %vm1318, %v1874, 0
  %v2002 = vsel %vm1318, %v1875, 0
  %2004 = vmatprep.subr.bf16.mxu0 0
  %2005 = vmatpush1.bf16.msra.mxu0 %v1990
  %2006 = vmatprep.subr.bf16.mxu0 0
  %2007 = vmatpush1.bf16.msra.mxu0 %v1991
  %2008 = vmatprep.subr.bf16.mxu0 0
  %2009 = vmatpush1.bf16.msra.mxu0 %v1992
  %2010 = vmatprep.subr.bf16.mxu0 0
  %2011 = vmatpush1.bf16.msra.mxu0 %v1993
  %2012 = vmatprep.subr.bf16.mxu0 0
  %2013 = vmatpush1.bf16.msra.mxu0 0
  %2014 = vmatprep.subr.bf16.mxu0 0
  %2015 = vmatpush1.bf16.msra.mxu0 0
  %2016 = vmatprep.subr.bf16.mxu0 0
  %2017 = vmatpush1.bf16.msra.mxu0 0
  %2018 = vmatprep.subr.bf16.mxu0 0
  %2019 = vmatpush1.bf16.msra.mxu0 0
  %2020 = vmatprep.subr.bf16.mxu0 0
  %2021 = vmatpush1.bf16.msra.mxu0 0
  %2022 = vmatprep.subr.bf16.mxu0 0
  %2023 = vmatpush1.bf16.msra.mxu0 0
  %2024 = vmatprep.subr.bf16.mxu0 0
  %2025 = vmatpush1.bf16.msra.mxu0 0
  %2026 = vmatprep.subr.bf16.mxu0 0
  %2027 = vmatpush1.bf16.msra.mxu0 0
  %2028 = vmatprep.subr.bf16.mxu0 0
  %2029 = vmatpush1.bf16.msra.mxu0 0
  %2030 = vmatprep.subr.bf16.mxu0 0
  %2031 = vmatpush1.bf16.msra.mxu0 0
  %2032 = vmatprep.subr.bf16.mxu0 0
  %2033 = vmatpush1.bf16.msra.mxu0 0
  %2034 = vmatprep.subr.bf16.mxu0 0
  %2035 = vmatpush1.bf16.msra.mxu0 0
  %2036 = vmatprep.mubr.bf16.mxu0 0
  %2037 = vmatmul.mubr.bf16.gmra.mrb[0].mxu0 %v1999
  %v2038 = vpop.f32.mrb[0].mxu0
  %v2039 = vadd.f32 %v1960, %v2038
  %v2040 = vpop.f32.mrb[0].mxu0
  %v2041 = vpop.f32.mrb[0].mxu0
  %v2042 = vadd.f32 %v1963, %v2041
  %v2043 = vpop.f32.mrb[0].mxu0
  %2044 = vmatprep.mubr.bf16.mxu0 0
  %2045 = vmatmul.mubr.bf16.gmra.mrb[0].mxu0 %v2002
  %v2046 = vpop.f32.mrb[0].mxu0
  %v2047 = vadd.f32 %v1968, %v2046
  %v2048 = vpop.f32.mrb[0].mxu0
  %v2049 = vpop.f32.mrb[0].mxu0
  %v2050 = vadd.f32 %v1971, %v2049
  %v2051 = vpop.f32.mrb[0].mxu0
  %2052 = vdwg.mxu0
  %v2053 = vpack.c.bf16 %v1767, %v1764
  %v2054 = vpack.c.bf16 %v1775, %v1772
  %s2055 = scalar_lea.vmem %s6, 64
  %v2056 = vld [vmem:[%s2055] sm:$0xf]
  %v2057 = vld [vmem:[%s2055 + $0x4] sm:$0xf]
  %v2058 = vld [vmem:[%s2055 + $0x8] sm:$0xf]
  %v2059 = vld [vmem:[%s2055 + $0xc] sm:$0xf]
  %v2060 = vld [vmem:[%s2055 + $0x10] sm:$0xf]
  %v2061 = vld [vmem:[%s2055 + $0x14] sm:$0xf]
  %v2062 = vld [vmem:[%s2055 + $0x18] sm:$0xf]
  %v2063 = vld [vmem:[%s2055 + $0x1c] sm:$0xf]
  %v2072 = vunpack.c.l.b16 %v2056
  %v2073 = vunpack.c.l.b16 %v2057
  %v2074 = vunpack.c.l.b16 %v2058
  %v2075 = vunpack.c.l.b16 %v2059
  %v2076 = vunpack.c.l.b16 %v2060
  %v2077 = vunpack.c.l.b16 %v2061
  %v2078 = vunpack.c.l.b16 %v2062
  %v2079 = vunpack.c.l.b16 %v2063
  %v2080 = vpack.c.b16 %v2073, %v2072
  %v2081 = vpack.c.b16 %v2075, %v2074
  %v2082 = vpack.c.b16 %v2077, %v2076
  %v2083 = vpack.c.b16 %v2079, %v2078
  %v2089 = vsel %vm1318, %v2053, 0
  %v2092 = vsel %vm1318, %v2054, 0
  %2094 = vmatprep.subr.bf16.mxu0 0
  %2095 = vmatpush1.bf16.msra.mxu0 %v2080
  %2096 = vmatprep.subr.bf16.mxu0 0
  %2097 = vmatpush1.bf16.msra.mxu0 %v2081
  %2098 = vmatprep.subr.bf16.mxu0 0
  %2099 = vmatpush1.bf16.msra.mxu0 %v2082
  %2100 = vmatprep.subr.bf16.mxu0 0
  %2101 = vmatpush1.bf16.msra.mxu0 %v2083
  %2102 = vmatprep.subr.bf16.mxu0 0
  %2103 = vmatpush1.bf16.msra.mxu0 0
  %2104 = vmatprep.subr.bf16.mxu0 0
  %2105 = vmatpush1.bf16.msra.mxu0 0
  %2106 = vmatprep.subr.bf16.mxu0 0
  %2107 = vmatpush1.bf16.msra.mxu0 0
  %2108 = vmatprep.subr.bf16.mxu0 0
  %2109 = vmatpush1.bf16.msra.mxu0 0
  %2110 = vmatprep.subr.bf16.mxu0 0
  %2111 = vmatpush1.bf16.msra.mxu0 0
  %2112 = vmatprep.subr.bf16.mxu0 0
  %2113 = vmatpush1.bf16.msra.mxu0 0
  %2114 = vmatprep.subr.bf16.mxu0 0
  %2115 = vmatpush1.bf16.msra.mxu0 0
  %2116 = vmatprep.subr.bf16.mxu0 0
  %2117 = vmatpush1.bf16.msra.mxu0 0
  %2118 = vmatprep.subr.bf16.mxu0 0
  %2119 = vmatpush1.bf16.msra.mxu0 0
  %2120 = vmatprep.subr.bf16.mxu0 0
  %2121 = vmatpush1.bf16.msra.mxu0 0
  %2122 = vmatprep.subr.bf16.mxu0 0
  %2123 = vmatpush1.bf16.msra.mxu0 0
  %2124 = vmatprep.subr.bf16.mxu0 0
  %2125 = vmatpush1.bf16.msra.mxu0 0
  %2126 = vmatprep.mubr.bf16.mxu0 0
  %2127 = vmatmul.mubr.bf16.gmra.mrb[0].mxu0 %v2089
  %v2128 = vpop.f32.mrb[0].mxu0
  %v2129 = vadd.f32 0.0, %v2128
  %v2130 = vpop.f32.mrb[0].mxu0
  %v2131 = vpop.f32.mrb[0].mxu0
  %v2132 = vadd.f32 0.0, %v2131
  %v2133 = vpop.f32.mrb[0].mxu0
  %2134 = vmatprep.mubr.bf16.mxu0 0
  %2135 = vmatmul.mubr.bf16.gmra.mrb[0].mxu0 %v2092
  %v2136 = vpop.f32.mrb[0].mxu0
  %v2137 = vadd.f32 0.0, %v2136
  %v2138 = vpop.f32.mrb[0].mxu0
  %v2139 = vpop.f32.mrb[0].mxu0
  %v2140 = vadd.f32 0.0, %v2139
  %v2141 = vpop.f32.mrb[0].mxu0
  %2142 = vdwg.mxu0
  %v2143 = vadd.f32 %v2039, %v2129
  %v2144 = vadd.f32 %v2042, %v2132
  %v2145 = vadd.f32 %v2047, %v2137
  %v2146 = vadd.f32 %v2050, %v2140
  %v2147 = vpack.c.bf16 %v1783, %v1780
  %v2148 = vpack.c.bf16 %v1791, %v1788
  %s2149 = scalar_lea.vmem %s6, 96
  %v2150 = vld [vmem:[%s2149] sm:$0xf]
  %v2151 = vld [vmem:[%s2149 + $0x4] sm:$0xf]
  %v2152 = vld [vmem:[%s2149 + $0x8] sm:$0xf]
  %v2153 = vld [vmem:[%s2149 + $0xc] sm:$0xf]
  %v2154 = vld [vmem:[%s2149 + $0x10] sm:$0xf]
  %v2155 = vld [vmem:[%s2149 + $0x14] sm:$0xf]
  %v2156 = vld [vmem:[%s2149 + $0x18] sm:$0xf]
  %v2157 = vld [vmem:[%s2149 + $0x1c] sm:$0xf]
  %v2166 = vunpack.c.l.b16 %v2150
  %v2167 = vunpack.c.l.b16 %v2151
  %v2168 = vunpack.c.l.b16 %v2152
  %v2169 = vunpack.c.l.b16 %v2153
  %v2170 = vunpack.c.l.b16 %v2154
  %v2171 = vunpack.c.l.b16 %v2155
  %v2172 = vunpack.c.l.b16 %v2156
  %v2173 = vunpack.c.l.b16 %v2157
  %v2174 = vpack.c.b16 %v2167, %v2166
  %v2175 = vpack.c.b16 %v2169, %v2168
  %v2176 = vpack.c.b16 %v2171, %v2170
  %v2177 = vpack.c.b16 %v2173, %v2172
  %v2183 = vsel %vm1318, %v2147, 0
  %v2186 = vsel %vm1318, %v2148, 0
  %2188 = vmatprep.subr.bf16.mxu0 0
  %2189 = vmatpush1.bf16.msra.mxu0 %v2174
  %2190 = vmatprep.subr.bf16.mxu0 0
  %2191 = vmatpush1.bf16.msra.mxu0 %v2175
  %2192 = vmatprep.subr.bf16.mxu0 0
  %2193 = vmatpush1.bf16.msra.mxu0 %v2176
  %2194 = vmatprep.subr.bf16.mxu0 0
  %2195 = vmatpush1.bf16.msra.mxu0 %v2177
  %2196 = vmatprep.subr.bf16.mxu0 0
  %2197 = vmatpush1.bf16.msra.mxu0 0
  %2198 = vmatprep.subr.bf16.mxu0 0
  %2199 = vmatpush1.bf16.msra.mxu0 0
  %2200 = vmatprep.subr.bf16.mxu0 0
  %2201 = vmatpush1.bf16.msra.mxu0 0
  %2202 = vmatprep.subr.bf16.mxu0 0
  %2203 = vmatpush1.bf16.msra.mxu0 0
  %2204 = vmatprep.subr.bf16.mxu0 0
  %2205 = vmatpush1.bf16.msra.mxu0 0
  %2206 = vmatprep.subr.bf16.mxu0 0
  %2207 = vmatpush1.bf16.msra.mxu0 0
  %2208 = vmatprep.subr.bf16.mxu0 0
  %2209 = vmatpush1.bf16.msra.mxu0 0
  %2210 = vmatprep.subr.bf16.mxu0 0
  %2211 = vmatpush1.bf16.msra.mxu0 0
  %2212 = vmatprep.subr.bf16.mxu0 0
  %2213 = vmatpush1.bf16.msra.mxu0 0
  %2214 = vmatprep.subr.bf16.mxu0 0
  %2215 = vmatpush1.bf16.msra.mxu0 0
  %2216 = vmatprep.subr.bf16.mxu0 0
  %2217 = vmatpush1.bf16.msra.mxu0 0
  %2218 = vmatprep.subr.bf16.mxu0 0
  %2219 = vmatpush1.bf16.msra.mxu0 0
  %2220 = vmatprep.mubr.bf16.mxu0 0
  %2221 = vmatmul.mubr.bf16.gmra.mrb[0].mxu0 %v2183
  %v2222 = vpop.f32.mrb[0].mxu0
  %v2223 = vadd.f32 0.0, %v2222
  %v2224 = vpop.f32.mrb[0].mxu0
  %v2225 = vpop.f32.mrb[0].mxu0
  %v2226 = vadd.f32 0.0, %v2225
  %v2227 = vpop.f32.mrb[0].mxu0
  %2228 = vmatprep.mubr.bf16.mxu0 0
  %2229 = vmatmul.mubr.bf16.gmra.mrb[0].mxu0 %v2186
  %v2230 = vpop.f32.mrb[0].mxu0
  %v2231 = vadd.f32 0.0, %v2230
  %v2232 = vpop.f32.mrb[0].mxu0
  %v2233 = vpop.f32.mrb[0].mxu0
  %v2234 = vadd.f32 0.0, %v2233
  %v2235 = vpop.f32.mrb[0].mxu0
  %2236 = vdwg.mxu0
  %v2237 = vadd.f32 %v2143, %v2223
  %v2238 = vadd.f32 %v2144, %v2226
  %v2239 = vadd.f32 %v2145, %v2231
  %v2240 = vadd.f32 %v2146, %v2234
  %v2241 = vpack.c.bf16 %v1799, %v1796
  %v2242 = vpack.c.bf16 %v1807, %v1804
  %s2243 = scalar_lea.vmem %s6, 128
  %v2244 = vld [vmem:[%s2243] sm:$0xf]
  %v2245 = vld [vmem:[%s2243 + $0x4] sm:$0xf]
  %v2246 = vld [vmem:[%s2243 + $0x8] sm:$0xf]
  %v2247 = vld [vmem:[%s2243 + $0xc] sm:$0xf]
  %v2248 = vld [vmem:[%s2243 + $0x10] sm:$0xf]
  %v2249 = vld [vmem:[%s2243 + $0x14] sm:$0xf]
  %v2250 = vld [vmem:[%s2243 + $0x18] sm:$0xf]
  %v2251 = vld [vmem:[%s2243 + $0x1c] sm:$0xf]
  %v2260 = vunpack.c.l.b16 %v2244
  %v2261 = vunpack.c.l.b16 %v2245
  %v2262 = vunpack.c.l.b16 %v2246
  %v2263 = vunpack.c.l.b16 %v2247
  %v2264 = vunpack.c.l.b16 %v2248
  %v2265 = vunpack.c.l.b16 %v2249
  %v2266 = vunpack.c.l.b16 %v2250
  %v2267 = vunpack.c.l.b16 %v2251
  %v2268 = vpack.c.b16 %v2261, %v2260
  %v2269 = vpack.c.b16 %v2263, %v2262
  %v2270 = vpack.c.b16 %v2265, %v2264
  %v2271 = vpack.c.b16 %v2267, %v2266
  %v2277 = vsel %vm1318, %v2241, 0
  %v2280 = vsel %vm1318, %v2242, 0
  %2282 = vmatprep.subr.bf16.mxu0 0
  %2283 = vmatpush1.bf16.msra.mxu0 %v2268
  %2284 = vmatprep.subr.bf16.mxu0 0
  %2285 = vmatpush1.bf16.msra.mxu0 %v2269
  %2286 = vmatprep.subr.bf16.mxu0 0
  %2287 = vmatpush1.bf16.msra.mxu0 %v2270
  %2288 = vmatprep.subr.bf16.mxu0 0
  %2289 = vmatpush1.bf16.msra.mxu0 %v2271
  %2290 = vmatprep.subr.bf16.mxu0 0
  %2291 = vmatpush1.bf16.msra.mxu0 0
  %2292 = vmatprep.subr.bf16.mxu0 0
  %2293 = vmatpush1.bf16.msra.mxu0 0
  %2294 = vmatprep.subr.bf16.mxu0 0
  %2295 = vmatpush1.bf16.msra.mxu0 0
  %2296 = vmatprep.subr.bf16.mxu0 0
  %2297 = vmatpush1.bf16.msra.mxu0 0
  %2298 = vmatprep.subr.bf16.mxu0 0
  %2299 = vmatpush1.bf16.msra.mxu0 0
  %2300 = vmatprep.subr.bf16.mxu0 0
  %2301 = vmatpush1.bf16.msra.mxu0 0
  %2302 = vmatprep.subr.bf16.mxu0 0
  %2303 = vmatpush1.bf16.msra.mxu0 0
  %2304 = vmatprep.subr.bf16.mxu0 0
  %2305 = vmatpush1.bf16.msra.mxu0 0
  %2306 = vmatprep.subr.bf16.mxu0 0
  %2307 = vmatpush1.bf16.msra.mxu0 0
  %2308 = vmatprep.subr.bf16.mxu0 0
  %2309 = vmatpush1.bf16.msra.mxu0 0
  %2310 = vmatprep.subr.bf16.mxu0 0
  %2311 = vmatpush1.bf16.msra.mxu0 0
  %2312 = vmatprep.subr.bf16.mxu0 0
  %2313 = vmatpush1.bf16.msra.mxu0 0
  %2314 = vmatprep.mubr.bf16.mxu0 0
  %2315 = vmatmul.mubr.bf16.gmra.mrb[0].mxu0 %v2277
  %v2316 = vpop.f32.mrb[0].mxu0
  %v2317 = vadd.f32 0.0, %v2316
  %v2318 = vpop.f32.mrb[0].mxu0
  %v2319 = vpop.f32.mrb[0].mxu0
  %v2320 = vadd.f32 0.0, %v2319
  %v2321 = vpop.f32.mrb[0].mxu0
  %2322 = vmatprep.mubr.bf16.mxu0 0
  %2323 = vmatmul.mubr.bf16.gmra.mrb[0].mxu0 %v2280
  %v2324 = vpop.f32.mrb[0].mxu0
  %v2325 = vadd.f32 0.0, %v2324
  %v2326 = vpop.f32.mrb[0].mxu0
  %v2327 = vpop.f32.mrb[0].mxu0
  %v2328 = vadd.f32 0.0, %v2327
  %v2329 = vpop.f32.mrb[0].mxu0
  %2330 = vdwg.mxu0
  %v2331 = vadd.f32 %v2237, %v2317
  %v2332 = vadd.f32 %v2238, %v2320
  %v2333 = vadd.f32 %v2239, %v2325
  %v2334 = vadd.f32 %v2240, %v2328
  %v2335 = vpack.c.bf16 %v1815, %v1812
  %v2336 = vpack.c.bf16 %v1823, %v1820
  %s2337 = scalar_lea.vmem %s6, 160
  %v2338 = vld [vmem:[%s2337] sm:$0xf]
  %v2339 = vld [vmem:[%s2337 + $0x4] sm:$0xf]
  %v2340 = vld [vmem:[%s2337 + $0x8] sm:$0xf]
  %v2341 = vld [vmem:[%s2337 + $0xc] sm:$0xf]
  %v2342 = vld [vmem:[%s2337 + $0x10] sm:$0xf]
  %v2343 = vld [vmem:[%s2337 + $0x14] sm:$0xf]
  %v2344 = vld [vmem:[%s2337 + $0x18] sm:$0xf]
  %v2345 = vld [vmem:[%s2337 + $0x1c] sm:$0xf]
  %v2354 = vunpack.c.l.b16 %v2338
  %v2355 = vunpack.c.l.b16 %v2339
  %v2356 = vunpack.c.l.b16 %v2340
  %v2357 = vunpack.c.l.b16 %v2341
  %v2358 = vunpack.c.l.b16 %v2342
  %v2359 = vunpack.c.l.b16 %v2343
  %v2360 = vunpack.c.l.b16 %v2344
  %v2361 = vunpack.c.l.b16 %v2345
  %v2362 = vpack.c.b16 %v2355, %v2354
  %v2363 = vpack.c.b16 %v2357, %v2356
  %v2364 = vpack.c.b16 %v2359, %v2358
  %v2365 = vpack.c.b16 %v2361, %v2360
  %v2371 = vsel %vm1318, %v2335, 0
  %v2374 = vsel %vm1318, %v2336, 0
  %2376 = vmatprep.subr.bf16.mxu0 0
  %2377 = vmatpush1.bf16.msra.mxu0 %v2362
  %2378 = vmatprep.subr.bf16.mxu0 0
  %2379 = vmatpush1.bf16.msra.mxu0 %v2363
  %2380 = vmatprep.subr.bf16.mxu0 0
  %2381 = vmatpush1.bf16.msra.mxu0 %v2364
  %2382 = vmatprep.subr.bf16.mxu0 0
  %2383 = vmatpush1.bf16.msra.mxu0 %v2365
  %2384 = vmatprep.subr.bf16.mxu0 0
  %2385 = vmatpush1.bf16.msra.mxu0 0
  %2386 = vmatprep.subr.bf16.mxu0 0
  %2387 = vmatpush1.bf16.msra.mxu0 0
  %2388 = vmatprep.subr.bf16.mxu0 0
  %2389 = vmatpush1.bf16.msra.mxu0 0
  %2390 = vmatprep.subr.bf16.mxu0 0
  %2391 = vmatpush1.bf16.msra.mxu0 0
  %2392 = vmatprep.subr.bf16.mxu0 0
  %2393 = vmatpush1.bf16.msra.mxu0 0
  %2394 = vmatprep.subr.bf16.mxu0 0
  %2395 = vmatpush1.bf16.msra.mxu0 0
  %2396 = vmatprep.subr.bf16.mxu0 0
  %2397 = vmatpush1.bf16.msra.mxu0 0
  %2398 = vmatprep.subr.bf16.mxu0 0
  %2399 = vmatpush1.bf16.msra.mxu0 0
  %2400 = vmatprep.subr.bf16.mxu0 0
  %2401 = vmatpush1.bf16.msra.mxu0 0
  %2402 = vmatprep.subr.bf16.mxu0 0
  %2403 = vmatpush1.bf16.msra.mxu0 0
  %2404 = vmatprep.subr.bf16.mxu0 0
  %2405 = vmatpush1.bf16.msra.mxu0 0
  %2406 = vmatprep.subr.bf16.mxu0 0
  %2407 = vmatpush1.bf16.msra.mxu0 0
  %2408 = vmatprep.mubr.bf16.mxu0 0
  %2409 = vmatmul.mubr.bf16.gmra.mrb[0].mxu0 %v2371
  %v2410 = vpop.f32.mrb[0].mxu0
  %v2411 = vadd.f32 0.0, %v2410
  %v2412 = vpop.f32.mrb[0].mxu0
  %v2413 = vpop.f32.mrb[0].mxu0
  %v2414 = vadd.f32 0.0, %v2413
  %v2415 = vpop.f32.mrb[0].mxu0
  %2416 = vmatprep.mubr.bf16.mxu0 0
  %2417 = vmatmul.mubr.bf16.gmra.mrb[0].mxu0 %v2374
  %v2418 = vpop.f32.mrb[0].mxu0
  %v2419 = vadd.f32 0.0, %v2418
  %v2420 = vpop.f32.mrb[0].mxu0
  %v2421 = vpop.f32.mrb[0].mxu0
  %v2422 = vadd.f32 0.0, %v2421
  %v2423 = vpop.f32.mrb[0].mxu0
  %2424 = vdwg.mxu0
  %v2425 = vadd.f32 %v2331, %v2411
  %v2426 = vadd.f32 %v2332, %v2414
  %v2427 = vadd.f32 %v2333, %v2419
  %v2428 = vadd.f32 %v2334, %v2422
  %v2429 = vpack.c.bf16 %v1831, %v1828
  %v2430 = vpack.c.bf16 %v1839, %v1836
  %s2431 = scalar_lea.vmem %s6, 192
  %v2432 = vld [vmem:[%s2431] sm:$0xf]
  %v2433 = vld [vmem:[%s2431 + $0x4] sm:$0xf]
  %v2434 = vld [vmem:[%s2431 + $0x8] sm:$0xf]
  %v2435 = vld [vmem:[%s2431 + $0xc] sm:$0xf]
  %v2436 = vld [vmem:[%s2431 + $0x10] sm:$0xf]
  %v2437 = vld [vmem:[%s2431 + $0x14] sm:$0xf]
  %v2438 = vld [vmem:[%s2431 + $0x18] sm:$0xf]
  %v2439 = vld [vmem:[%s2431 + $0x1c] sm:$0xf]
  %v2448 = vunpack.c.l.b16 %v2432
  %v2449 = vunpack.c.l.b16 %v2433
  %v2450 = vunpack.c.l.b16 %v2434
  %v2451 = vunpack.c.l.b16 %v2435
  %v2452 = vunpack.c.l.b16 %v2436
  %v2453 = vunpack.c.l.b16 %v2437
  %v2454 = vunpack.c.l.b16 %v2438
  %v2455 = vunpack.c.l.b16 %v2439
  %v2456 = vpack.c.b16 %v2449, %v2448
  %v2457 = vpack.c.b16 %v2451, %v2450
  %v2458 = vpack.c.b16 %v2453, %v2452
  %v2459 = vpack.c.b16 %v2455, %v2454
  %v2465 = vsel %vm1318, %v2429, 0
  %v2468 = vsel %vm1318, %v2430, 0
  %2470 = vmatprep.subr.bf16.mxu0 0
  %2471 = vmatpush1.bf16.msra.mxu0 %v2456
  %2472 = vmatprep.subr.bf16.mxu0 0
  %2473 = vmatpush1.bf16.msra.mxu0 %v2457
  %2474 = vmatprep.subr.bf16.mxu0 0
  %2475 = vmatpush1.bf16.msra.mxu0 %v2458
  %2476 = vmatprep.subr.bf16.mxu0 0
  %2477 = vmatpush1.bf16.msra.mxu0 %v2459
  %2478 = vmatprep.subr.bf16.mxu0 0
  %2479 = vmatpush1.bf16.msra.mxu0 0
  %2480 = vmatprep.subr.bf16.mxu0 0
  %2481 = vmatpush1.bf16.msra.mxu0 0
  %2482 = vmatprep.subr.bf16.mxu0 0
  %2483 = vmatpush1.bf16.msra.mxu0 0
  %2484 = vmatprep.subr.bf16.mxu0 0
  %2485 = vmatpush1.bf16.msra.mxu0 0
  %2486 = vmatprep.subr.bf16.mxu0 0
  %2487 = vmatpush1.bf16.msra.mxu0 0
  %2488 = vmatprep.subr.bf16.mxu0 0
  %2489 = vmatpush1.bf16.msra.mxu0 0
  %2490 = vmatprep.subr.bf16.mxu0 0
  %2491 = vmatpush1.bf16.msra.mxu0 0
  %2492 = vmatprep.subr.bf16.mxu0 0
  %2493 = vmatpush1.bf16.msra.mxu0 0
  %2494 = vmatprep.subr.bf16.mxu0 0
  %2495 = vmatpush1.bf16.msra.mxu0 0
  %2496 = vmatprep.subr.bf16.mxu0 0
  %2497 = vmatpush1.bf16.msra.mxu0 0
  %2498 = vmatprep.subr.bf16.mxu0 0
  %2499 = vmatpush1.bf16.msra.mxu0 0
  %2500 = vmatprep.subr.bf16.mxu0 0
  %2501 = vmatpush1.bf16.msra.mxu0 0
  %2502 = vmatprep.mubr.bf16.mxu0 0
  %2503 = vmatmul.mubr.bf16.gmra.mrb[0].mxu0 %v2465
  %v2504 = vpop.f32.mrb[0].mxu0
  %v2505 = vadd.f32 0.0, %v2504
  %v2506 = vpop.f32.mrb[0].mxu0
  %v2507 = vpop.f32.mrb[0].mxu0
  %v2508 = vadd.f32 0.0, %v2507
  %v2509 = vpop.f32.mrb[0].mxu0
  %2510 = vmatprep.mubr.bf16.mxu0 0
  %2511 = vmatmul.mubr.bf16.gmra.mrb[0].mxu0 %v2468
  %v2512 = vpop.f32.mrb[0].mxu0
  %v2513 = vadd.f32 0.0, %v2512
  %v2514 = vpop.f32.mrb[0].mxu0
  %v2515 = vpop.f32.mrb[0].mxu0
  %v2516 = vadd.f32 0.0, %v2515
  %v2517 = vpop.f32.mrb[0].mxu0
  %2518 = vdwg.mxu0
  %v2519 = vadd.f32 %v2425, %v2505
  %v2520 = vadd.f32 %v2426, %v2508
  %v2521 = vadd.f32 %v2427, %v2513
  %v2522 = vadd.f32 %v2428, %v2516
  %v2523 = vpack.c.bf16 %v1847, %v1844
  %v2524 = vpack.c.bf16 %v1855, %v1852
  %s2525 = scalar_lea.vmem %s6, 224
  %v2526 = vld [vmem:[%s2525] sm:$0xf]
  %v2527 = vld [vmem:[%s2525 + $0x4] sm:$0xf]
  %v2528 = vld [vmem:[%s2525 + $0x8] sm:$0xf]
  %v2529 = vld [vmem:[%s2525 + $0xc] sm:$0xf]
  %v2530 = vld [vmem:[%s2525 + $0x10] sm:$0xf]
  %v2531 = vld [vmem:[%s2525 + $0x14] sm:$0xf]
  %v2532 = vld [vmem:[%s2525 + $0x18] sm:$0xf]
  %v2533 = vld [vmem:[%s2525 + $0x1c] sm:$0xf]
  %v2542 = vunpack.c.l.b16 %v2526
  %v2543 = vunpack.c.l.b16 %v2527
  %v2544 = vunpack.c.l.b16 %v2528
  %v2545 = vunpack.c.l.b16 %v2529
  %v2546 = vunpack.c.l.b16 %v2530
  %v2547 = vunpack.c.l.b16 %v2531
  %v2548 = vunpack.c.l.b16 %v2532
  %v2549 = vunpack.c.l.b16 %v2533
  %v2550 = vpack.c.b16 %v2543, %v2542
  %v2551 = vpack.c.b16 %v2545, %v2544
  %v2552 = vpack.c.b16 %v2547, %v2546
  %v2553 = vpack.c.b16 %v2549, %v2548
  %v2559 = vsel %vm1318, %v2523, 0
  %v2562 = vsel %vm1318, %v2524, 0
  %2564 = vmatprep.subr.bf16.mxu0 0
  %2565 = vmatpush1.bf16.msra.mxu0 %v2550
  %2566 = vmatprep.subr.bf16.mxu0 0
  %2567 = vmatpush1.bf16.msra.mxu0 %v2551
  %2568 = vmatprep.subr.bf16.mxu0 0
  %2569 = vmatpush1.bf16.msra.mxu0 %v2552
  %2570 = vmatprep.subr.bf16.mxu0 0
  %2571 = vmatpush1.bf16.msra.mxu0 %v2553
  %2572 = vmatprep.subr.bf16.mxu0 0
  %2573 = vmatpush1.bf16.msra.mxu0 0
  %2574 = vmatprep.subr.bf16.mxu0 0
  %2575 = vmatpush1.bf16.msra.mxu0 0
  %2576 = vmatprep.subr.bf16.mxu0 0
  %2577 = vmatpush1.bf16.msra.mxu0 0
  %2578 = vmatprep.subr.bf16.mxu0 0
  %2579 = vmatpush1.bf16.msra.mxu0 0
  %2580 = vmatprep.subr.bf16.mxu0 0
  %2581 = vmatpush1.bf16.msra.mxu0 0
  %2582 = vmatprep.subr.bf16.mxu0 0
  %2583 = vmatpush1.bf16.msra.mxu0 0
  %2584 = vmatprep.subr.bf16.mxu0 0
  %2585 = vmatpush1.bf16.msra.mxu0 0
  %2586 = vmatprep.subr.bf16.mxu0 0
  %2587 = vmatpush1.bf16.msra.mxu0 0
  %2588 = vmatprep.subr.bf16.mxu0 0
  %2589 = vmatpush1.bf16.msra.mxu0 0
  %2590 = vmatprep.subr.bf16.mxu0 0
  %2591 = vmatpush1.bf16.msra.mxu0 0
  %2592 = vmatprep.subr.bf16.mxu0 0
  %2593 = vmatpush1.bf16.msra.mxu0 0
  %2594 = vmatprep.subr.bf16.mxu0 0
  %2595 = vmatpush1.bf16.msra.mxu0 0
  %2596 = vmatprep.mubr.bf16.mxu0 0
  %2597 = vmatmul.mubr.bf16.gmra.mrb[0].mxu0 %v2559
  %v2598 = vpop.f32.mrb[0].mxu0
  %v2599 = vadd.f32 0.0, %v2598
  %v2600 = vpop.f32.mrb[0].mxu0
  %v2601 = vpop.f32.mrb[0].mxu0
  %v2602 = vadd.f32 0.0, %v2601
  %v2603 = vpop.f32.mrb[0].mxu0
  %2604 = vmatprep.mubr.bf16.mxu0 0
  %2605 = vmatmul.mubr.bf16.gmra.mrb[0].mxu0 %v2562
  %v2606 = vpop.f32.mrb[0].mxu0
  %v2607 = vadd.f32 0.0, %v2606
  %v2608 = vpop.f32.mrb[0].mxu0
  %v2609 = vpop.f32.mrb[0].mxu0
  %v2610 = vadd.f32 0.0, %v2609
  %v2611 = vpop.f32.mrb[0].mxu0
  %2612 = vdwg.mxu0
  %v2613 = vadd.f32 %v2519, %v2599
  %v2614 = vadd.f32 %v2520, %v2602
  %v2615 = vadd.f32 %v2521, %v2607
  %v2616 = vadd.f32 %v2522, %v2610
  %v2617 = vpack.c.bf16 %v1863, %v1860
  %v2618 = vpack.c.bf16 %v1871, %v1868
  %s2619 = scalar_lea.vmem %s6, 256
  %v2620 = vld [vmem:[%s2619] sm:$0xf]
  %v2621 = vld [vmem:[%s2619 + $0x4] sm:$0xf]
  %v2622 = vld [vmem:[%s2619 + $0x8] sm:$0xf]
  %v2623 = vld [vmem:[%s2619 + $0xc] sm:$0xf]
  %v2624 = vld [vmem:[%s2619 + $0x10] sm:$0xf]
  %v2625 = vld [vmem:[%s2619 + $0x14] sm:$0xf]
  %v2626 = vld [vmem:[%s2619 + $0x18] sm:$0xf]
  %v2627 = vld [vmem:[%s2619 + $0x1c] sm:$0xf]
  %v2636 = vunpack.c.l.b16 %v2620
  %v2637 = vunpack.c.l.b16 %v2621
  %v2638 = vunpack.c.l.b16 %v2622
  %v2639 = vunpack.c.l.b16 %v2623
  %v2640 = vunpack.c.l.b16 %v2624
  %v2641 = vunpack.c.l.b16 %v2625
  %v2642 = vunpack.c.l.b16 %v2626
  %v2643 = vunpack.c.l.b16 %v2627
  %v2644 = vpack.c.b16 %v2637, %v2636
  %v2645 = vpack.c.b16 %v2639, %v2638
  %v2646 = vpack.c.b16 %v2641, %v2640
  %v2647 = vpack.c.b16 %v2643, %v2642
  %v2653 = vsel %vm1318, %v2617, 0
  %v2656 = vsel %vm1318, %v2618, 0
  %2658 = vmatprep.subr.bf16.mxu0 0
  %2659 = vmatpush1.bf16.msra.mxu0 %v2644
  %2660 = vmatprep.subr.bf16.mxu0 0
  %2661 = vmatpush1.bf16.msra.mxu0 %v2645
  %2662 = vmatprep.subr.bf16.mxu0 0
  %2663 = vmatpush1.bf16.msra.mxu0 %v2646
  %2664 = vmatprep.subr.bf16.mxu0 0
  %2665 = vmatpush1.bf16.msra.mxu0 %v2647
  %2666 = vmatprep.subr.bf16.mxu0 0
  %2667 = vmatpush1.bf16.msra.mxu0 0
  %2668 = vmatprep.subr.bf16.mxu0 0
  %2669 = vmatpush1.bf16.msra.mxu0 0
  %2670 = vmatprep.subr.bf16.mxu0 0
  %2671 = vmatpush1.bf16.msra.mxu0 0
  %2672 = vmatprep.subr.bf16.mxu0 0
  %2673 = vmatpush1.bf16.msra.mxu0 0
  %2674 = vmatprep.subr.bf16.mxu0 0
  %2675 = vmatpush1.bf16.msra.mxu0 0
  %2676 = vmatprep.subr.bf16.mxu0 0
  %2677 = vmatpush1.bf16.msra.mxu0 0
  %2678 = vmatprep.subr.bf16.mxu0 0
  %2679 = vmatpush1.bf16.msra.mxu0 0
  %2680 = vmatprep.subr.bf16.mxu0 0
  %2681 = vmatpush1.bf16.msra.mxu0 0
  %2682 = vmatprep.subr.bf16.mxu0 0
  %2683 = vmatpush1.bf16.msra.mxu0 0
  %2684 = vmatprep.subr.bf16.mxu0 0
  %2685 = vmatpush1.bf16.msra.mxu0 0
  %2686 = vmatprep.subr.bf16.mxu0 0
  %2687 = vmatpush1.bf16.msra.mxu0 0
  %2688 = vmatprep.subr.bf16.mxu0 0
  %2689 = vmatpush1.bf16.msra.mxu0 0
  %2690 = vmatprep.mubr.bf16.mxu0 0
  %2691 = vmatmul.mubr.bf16.gmra.mrb[0].mxu0 %v2653
  %v2692 = vpop.f32.mrb[0].mxu0
  %v2693 = vadd.f32 0.0, %v2692
  %v2694 = vpop.f32.mrb[0].mxu0
  %v2695 = vpop.f32.mrb[0].mxu0
  %v2696 = vadd.f32 0.0, %v2695
  %v2697 = vpop.f32.mrb[0].mxu0
  %2698 = vmatprep.mubr.bf16.mxu0 0
  %2699 = vmatmul.mubr.bf16.gmra.mrb[0].mxu0 %v2656
  %v2700 = vpop.f32.mrb[0].mxu0
  %v2701 = vadd.f32 0.0, %v2700
  %v2702 = vpop.f32.mrb[0].mxu0
  %v2703 = vpop.f32.mrb[0].mxu0
  %v2704 = vadd.f32 0.0, %v2703
  %v2705 = vpop.f32.mrb[0].mxu0
  %2706 = vdwg.mxu0
  %v2707 = vadd.f32 %v2613, %v2693
  %v2708 = vadd.f32 %v2614, %v2696
  %v2709 = vadd.f32 %v2615, %v2701
  %v2710 = vadd.f32 %v2616, %v2704
  %v2711 = vadd.f32 %v2707, %v2708
  %v2712 = vadd.f32 %v2711, %v2709
  %v2713 = vadd.f32 %v2712, %v2710
  %v2714 = vrot.slane %v2713, 4
  %v2715 = vadd.f32 %v2713, %v2714
  %v2716 = vrot.slane %v2715, 2
  %v2717 = vadd.f32 %v2715, %v2716
  %v2718 = vrot.slane %v2717, 1
  %v2719 = vadd.f32 %v2717, %v2718
  %v2720 = vrcp.pop 32.0
  %v2721 = vmul.f32 %v2719, %v2720
  %v2722 = vsub.f32 %v2707, %v2721
  %v2723 = vsub.f32 %v2708, %v2721
  %v2724 = vsub.f32 %v2709, %v2721
  %v2725 = vsub.f32 %v2710, %v2721
  %v2726 = vmul.f32 %v2722, %v2722
  %v2727 = vmul.f32 %v2723, %v2723
  %v2728 = vmul.f32 %v2724, %v2724
  %v2729 = vmul.f32 %v2725, %v2725
  %v2730 = vadd.f32 %v2726, %v2727
  %v2731 = vadd.f32 %v2730, %v2728
  %v2732 = vadd.f32 %v2731, %v2729
  %v2733 = vrot.slane %v2732, 4
  %v2734 = vadd.f32 %v2732, %v2733
  %v2735 = vrot.slane %v2734, 2
  %v2736 = vadd.f32 %v2734, %v2735
  %v2737 = vrot.slane %v2736, 1
  %v2738 = vadd.f32 %v2736, %v2737
  %v2739 = vmul.f32 %v2738, %v2720
  %v2740 = vadd.f32 %v2739, 1e-05
  %v2741 = vrsqrt.pop %v2740
  %v2742 = vmul.f32 %v2722, %v2741
  %v2743 = vmul.f32 %v2723, %v2741
  %v2744 = vmul.f32 %v2724, %v2741
  %v2745 = vmul.f32 %v2725, %v2741
  %v2746 = vld [vmem:[%s7] sm:$0x1]
  %v2748 = vlaneseq
  %v2749 = vshrl.u32 %v2748, 7
  %v2750 = vsub.s32 0, %v2749
  %v2751 = vrot.slane %v2746, %v2750
  %v2753 = vmul.f32 %v2742, %v2751
  %v2754 = vmul.f32 %v2743, %v2751
  %v2755 = vmul.f32 %v2744, %v2751
  %v2756 = vmul.f32 %v2745, %v2751
  %v2757 = vld [vmem:[%s8] sm:$0x1]
  %v2759 = vlaneseq
  %v2760 = vshrl.u32 %v2759, 7
  %v2761 = vsub.s32 0, %v2760
  %v2762 = vrot.slane %v2757, %v2761
  %v2764 = vadd.f32 %v2753, %v2762
  %v2765 = vadd.f32 %v2754, %v2762
  %v2766 = vadd.f32 %v2755, %v2762
  %v2767 = vadd.f32 %v2756, %v2762
  %vm2768 = vcmp.ge.f32.partialorder %v2764, 0.0
  %vm2769 = vcmp.ge.f32.partialorder %v2765, 0.0
  %vm2770 = vcmp.ge.f32.partialorder %v2766, 0.0
  %vm2771 = vcmp.ge.f32.partialorder %v2767, 0.0
  %v2772 = vmul.f32 %v2764, 0.2
  %v2773 = vmul.f32 %v2765, 0.2
  %v2774 = vmul.f32 %v2766, 0.2
  %v2775 = vmul.f32 %v2767, 0.2
  %v2776 = vsel %vm2768, %v2764, %v2772
  %v2777 = vsel %vm2769, %v2765, %v2773
  %v2778 = vsel %vm2770, %v2766, %v2774
  %v2779 = vsel %vm2771, %v2767, %v2775
  %v2780 = vpack.c.bf16 %v2777, %v2776
  %v2781 = vpack.c.bf16 %v2779, %v2778
  %v2782 = vunpack.c.l.bf16 %v2780
  %v2783 = vunpack.c.h.bf16 %v2780
  %v2784 = vunpack.c.l.bf16 %v2781
  %v2785 = vunpack.c.h.bf16 %v2781
  %v2786 = vld [vmem:[%s9] sm:$0xf]
  %v2787 = vld [vmem:[%s9 + $0x4] sm:$0xf]
  %v2788 = vld [vmem:[%s9 + $0x8] sm:$0xf]
  %v2789 = vld [vmem:[%s9 + $0xc] sm:$0xf]
  %v2790 = vunpack.c.l.bf16 %v2786
  %v2791 = vunpack.c.l.bf16 %v2787
  %v2792 = vunpack.c.l.bf16 %v2788
  %v2793 = vunpack.c.l.bf16 %v2789
  %v2794 = vmul.f32 %v2782, %v2790
  %v2795 = vmul.f32 %v2783, %v2791
  %v2796 = vmul.f32 %v2784, %v2792
  %v2797 = vmul.f32 %v2785, %v2793
  %2798 = vadd.xlane.f32.xlu0 %v2794
  %v2799 = vpop.xlane.xlu0 %2798
  %2800 = vadd.xlane.f32.xlu0 %v2795
  %v2801 = vpop.xlane.xlu0 %2800
  %2802 = vadd.xlane.f32.xlu0 %v2796
  %v2803 = vpop.xlane.xlu0 %2802
  %2804 = vadd.xlane.f32.xlu0 %v2797
  %v2805 = vpop.xlane.xlu0 %2804
  %v2806 = vadd.f32 %v2799, %v2801
  %v2807 = vrot.slane %v2806, 4
  %v2808 = vadd.f32 %v2806, %v2807
  %v2809 = vrot.slane %v2808, 2
  %v2810 = vadd.f32 %v2808, %v2809
  %v2811 = vrot.slane %v2810, 1
  %v2812 = vadd.f32 %v2810, %v2811
  %v2813 = vadd.f32 %v2803, %v2805
  %v2814 = vrot.slane %v2813, 4
  %v2815 = vadd.f32 %v2813, %v2814
  %v2816 = vrot.slane %v2815, 2
  %v2817 = vadd.f32 %v2815, %v2816
  %v2818 = vrot.slane %v2817, 1
  %v2819 = vadd.f32 %v2817, %v2818
  %v2820 = vsel %vm1693, %v2812, %v2819
  %v2821 = vsub.f32 0.0, %v2820
  %v2822 = vmul.f32 %v2821, 1.442695
  %v2823 = vpow.pop %v2822
  %v2824 = vadd.f32 %v2823, 1.0
  %v2825 = vrcp.pop %v2824
  %v2826 = vmul.f32 1.0, %v2825
  %vm2827 = vcmask 1024
  %2828 = vst.msk [vmem:[%s10] sm:$0x3] %vm2827, %v2826
  // Predicated region
  $region42: #{mnist_discriminator_forward.1} parent=0 // pred_check
    _
  $region43: #{mnist_discriminator_forward.1} parent=0 // pred_check_branch
    %2830 = sbr.rel (0) target = $region45
  $region44: #{mnist_discriminator_forward.1} parent=0 // pred_region
    _
  $region45: #{mnist_discriminator_forward.1} parent=0 // pred_fallthru
    _
  // Predicated region
  $region46: #{mnist_discriminator_forward.1} parent=0 // pred_check
    _
  $region47: #{mnist_discriminator_forward.1} parent=0 // pred_check_branch
    %2832 = sbr.rel (0) target = $region49
  $region48: #{mnist_discriminator_forward.1} parent=0 // pred_region
    _
  $region49: #{mnist_discriminator_forward.1} parent=0 // pred_fallthru
    _

</llo_original>
